<compile_context>
chip_gen: v7x
topology: tpu7x:2x2x1
jax: 0.10.0
libtpu: 0.0.40
codegen_flags: <defaults>
</compile_context>

<pallas_src>
import jax
import jax.numpy as jnp
from jax.experimental import pallas as pl
from jax.experimental.pallas import tpu as pltpu


# ----------------------------------------------------------------------------
# Pallas kernel: one grid step per batch block; both TTA branches in one pass.
# ----------------------------------------------------------------------------
def _tta_fused_kernel(x_ref, w1_ref, b1_ref, w2_ref, b2_ref, logits_ref, prob_ref):
    Bb, C, S = x_ref.shape          # batch block, in-channels, flattened spatial
    K2 = w1_ref.shape[1]            # 2 * Chid  (identity branch || channel-flip branch)
    Chid = w2_ref.shape[0]

    x = x_ref[...].astype(jnp.float32)     # [Bb, C, S]   (lane-dense: S in lanes)
    w1 = w1_ref[...].astype(jnp.float32)   # [C, K2]

    # 1x1 conv (channel mix) for BOTH TTA branches at once.
    # C is tiny (=4): unrolled VPU multiply-accumulate; keeps h lane-dense [Bb, K2, S].
    h = w1[0, :][None, :, None] * x[:, 0, :][:, None, :]
    for c in range(1, C):
        h = h + w1[c, :][None, :, None] * x[:, c, :][:, None, :]

    # bias + ReLU            b1_ref: [K2, 1]  -> broadcast over (Bb, ., S)
    h = jnp.maximum(h + b1_ref[...][None], 0.0)        # [Bb, K2, S]

    # global average pool over spatial positions (lane reduction, XLU/VPU slot)
    pooled = jnp.mean(h, axis=-1)                       # [Bb, K2]

    p0 = pooled[:, :Chid]       # identity branch
    p1 = pooled[:, Chid:]       # torch.fliplr (channel-flip) branch

    w2 = w2_ref[...]                                    # [Chid, NC]
    b2 = b2_ref[...]                                    # [1, NC]
    l0 = jnp.dot(p0, w2, preferred_element_type=jnp.float32) + b2   # [Bb, NC]
    l1 = jnp.dot(p1, w2, preferred_element_type=jnp.float32) + b2   # [Bb, NC]

    def _softmax(l):
        m = jnp.max(l, axis=-1, keepdims=True)
        e = jnp.exp(l - m)
        return e * pl.reciprocal(jnp.sum(e, axis=-1, keepdims=True), approx=True)

    # TTA mean aggregation (logits and probs averaged separately, as in PyTorch)
    logits_ref[...] = (0.5 * (l0 + l1)).astype(logits_ref.dtype)
    prob_ref[...] = (0.5 * (_softmax(l0) + _softmax(l1))).astype(prob_ref.dtype)


def tta_forward(x_nchw, w1, b1, w2, b2, *, compute_dtype=jnp.float32, batch_block=8):
    """TTAWrapper.forward: returns (mean_logits, mean_prob), each [B, NC]."""
    B, C, H, W = x_nchw.shape
    HW = H * W
    Chid = w1.shape[1]
    NC = w2.shape[1]

    # --- TTA fusion (plain JAX glue) -----------------------------------------
    # funcs = [identity, torch.fliplr]; fliplr flips axis 1 (= channel axis on NCHW).
    # The first layer is a pure channel mix, so  flip(x, 1) @ w1 == x @ flip(w1, 0):
    # both branches share one pass over x with a concatenated [C, 2*Chid] weight.
    w1cat = jnp.concatenate([w1, jnp.flip(w1, axis=0)], axis=1).astype(compute_dtype)
    b1cat = jnp.concatenate([b1, b1], axis=0).reshape(2 * Chid, 1).astype(jnp.float32)
    w2f = w2.astype(jnp.float32)
    b2f = b2.reshape(1, NC).astype(jnp.float32)

    # lane-dense input: NCHW -> [B, C, H*W] is a free reshape (no transpose, no stack).
    x_flat = x_nchw.reshape(B, C, HW).astype(compute_dtype)

    # pad batch to a sublane-aligned block so the grid axis can be 'parallel'
    # (keeps every block either (8,128)-aligned or equal to the full array dims).
    Bb = batch_block
    Bp = ((B + Bb - 1) // Bb) * Bb
    if Bp != B:
        x_flat = jnp.pad(x_flat, ((0, Bp - B), (0, 0), (0, 0)))

    logits, prob = pl.pallas_call(
        _tta_fused_kernel,
        out_shape=(
            jax.ShapeDtypeStruct((Bp, NC), jnp.float32),
            jax.ShapeDtypeStruct((Bp, NC), jnp.float32),
        ),
        grid_spec=pltpu.PrefetchScalarGridSpec(
            num_scalar_prefetch=0,
            grid=(Bp // Bb,),
            in_specs=[
                pl.BlockSpec((Bb, C, HW), lambda i: (i, 0, 0)),      # x (lane-dense)
                pl.BlockSpec((C, 2 * Chid), lambda i: (0, 0)),       # w1 || flip(w1,0)
                pl.BlockSpec((2 * Chid, 1), lambda i: (0, 0)),       # b1 || b1
                pl.BlockSpec((Chid, NC), lambda i: (0, 0)),          # w2
                pl.BlockSpec((1, NC), lambda i: (0, 0)),             # b2
            ],
            out_specs=[
                pl.BlockSpec((Bb, NC), lambda i: (i, 0)),
                pl.BlockSpec((Bb, NC), lambda i: (i, 0)),
            ],
        ),
        compiler_params=pltpu.CompilerParams(
            # each grid step writes its own output block -> safe to run in parallel
            # (feeds both TensorCores on v7x for larger B).
            dimension_semantics=("parallel",),
        ),
    )(x_flat, w1cat, b1cat, w2f, b2f)

    return logits[:B], prob[:B]


# ----------------------------------------------------------------------------
# Pure-JAX reference (for correctness check only)
# ----------------------------------------------------------------------------
def _model_ref(x_nchw, w1, b1, w2, b2):
    B, C, H, W = x_nchw.shape
    x = x_nchw.transpose(0, 2, 3, 1).reshape(B, H * W, C).astype(jnp.float32)
    h = jnp.maximum(jnp.einsum("bsc,ch->bsh", x, w1) + b1[None, None, :], 0.0)
    pooled = h.mean(axis=1)
    logits = pooled @ w2 + b2[None, :]
    prob = jax.nn.softmax(logits, axis=-1)
    return logits, prob


def _tta_ref(x_nchw, w1, b1, w2, b2):
    outs = [_model_ref(a, w1, b1, w2, b2)
            for a in (x_nchw, jnp.flip(x_nchw, axis=1))]
    logits = jnp.stack([o[0] for o in outs], 0).mean(0)
    prob = jnp.stack([o[1] for o in outs], 0).mean(0)
    return logits, prob


if __name__ == "__main__":
    B, C, H, W = 2, 4, 16, 16
    Chid, NC = 32, 10

    key = jax.random.PRNGKey(0)
    kx, k1, k2, k3, k4 = jax.random.split(key, 5)

    x = jax.random.normal(kx, (B, C, H, W), dtype=jnp.float32)
    w1 = 0.1 * jax.random.normal(k1, (C, Chid), dtype=jnp.float32)
    b1 = 0.01 * jax.random.normal(k2, (Chid,), dtype=jnp.float32)
    w2 = 0.1 * jax.random.normal(k3, (Chid, NC), dtype=jnp.float32)
    b2 = 0.01 * jax.random.normal(k4, (NC,), dtype=jnp.float32)

    ref_logits, ref_prob = _tta_ref(x, w1, b1, w2, b2)

    # f32 path (default): tolerance covers the approx EUP reciprocal in softmax.
    logits, prob = tta_forward(x, w1, b1, w2, b2)
    jax.block_until_ready((logits, prob))
    assert jnp.allclose(logits, ref_logits, atol=2e-3, rtol=2e-3), "logits mismatch (f32)"
    assert jnp.allclose(prob, ref_prob, atol=2e-3, rtol=2e-3), "prob mismatch (f32)"

    # bf16 x/w1 (v6e/v7x bandwidth optimization), f32 accumulation -> looser tolerance.
    logits_bf, prob_bf = tta_forward(x, w1, b1, w2, b2, compute_dtype=jnp.bfloat16)
    jax.block_until_ready((logits_bf, prob_bf))
    assert jnp.allclose(logits_bf, ref_logits, atol=2e-2, rtol=2e-2), "logits mismatch (bf16)"
    assert jnp.allclose(prob_bf, ref_prob, atol=2e-2, rtol=2e-2), "prob mismatch (bf16)"

    print("KERNEL_OK")
</pallas_src>

<mosaic_0001>
module attributes {stable_mosaic.version = 11 : i64} {
  func.func @_tta_fused_kernel(%arg0: i32, %arg1: memref<8x4x256xf32, #tpu.memory_space<vmem>>, %arg2: memref<4x64xf32, #tpu.memory_space<vmem>>, %arg3: memref<64x1xf32, #tpu.memory_space<vmem>>, %arg4: memref<32x10xf32, #tpu.memory_space<vmem>>, %arg5: memref<1x10xf32, #tpu.memory_space<vmem>>, %arg6: memref<8x10xf32, #tpu.memory_space<vmem>>, %arg7: memref<8x10xf32, #tpu.memory_space<vmem>>) attributes {dimension_semantics = [#tpu.dimension_semantics<parallel>], iteration_bounds = array<i64: 1>, scalar_prefetch = 0 : i64, scratch_operands = 0 : i64, tpu.core_type = #tpu.core_type<tc>, window_params = [{transform_indices = @transform_0, window_bounds = array<i64: 8, 4, 256>}, {pipeline_mode = #tpu.pipeline_mode<synchronous>, transform_indices = @transform_1, window_bounds = array<i64: 4, 64>}, {pipeline_mode = #tpu.pipeline_mode<synchronous>, transform_indices = @transform_2, window_bounds = array<i64: 64, 1>}, {pipeline_mode = #tpu.pipeline_mode<synchronous>, transform_indices = @transform_3, window_bounds = array<i64: 32, 10>}, {pipeline_mode = #tpu.pipeline_mode<synchronous>, transform_indices = @transform_4, window_bounds = array<i64: 1, 10>}, {transform_indices = @transform_5, window_bounds = array<i64: 8, 10>}, {transform_indices = @transform_6, window_bounds = array<i64: 8, 10>}]} {
    %c0 = arith.constant 0 : index
    %c0_0 = arith.constant 0 : index
    %c0_1 = arith.constant 0 : index
    %0 = vector.load %arg1[%c0, %c0_0, %c0_1] : memref<8x4x256xf32, #tpu.memory_space<vmem>>, vector<8x4x256xf32>
    %c0_2 = arith.constant 0 : index
    %c0_3 = arith.constant 0 : index
    %1 = vector.load %arg2[%c0_2, %c0_3] : memref<4x64xf32, #tpu.memory_space<vmem>>, vector<4x64xf32>
    %2 = vector.extract_strided_slice %1 {offsets = [0, 0], sizes = [1, 64], strides = [1, 1]} : vector<4x64xf32> to vector<1x64xf32>
    %3 = vector.shape_cast %2 : vector<1x64xf32> to vector<64xf32>
    %4 = vector.shape_cast %3 : vector<64xf32> to vector<1x64x1xf32>
    %5 = vector.extract_strided_slice %0 {offsets = [0, 0, 0], sizes = [8, 1, 256], strides = [1, 1, 1]} : vector<8x4x256xf32> to vector<8x1x256xf32>
    %6 = vector.shape_cast %5 : vector<8x1x256xf32> to vector<8x256xf32>
    %7 = vector.shape_cast %6 : vector<8x256xf32> to vector<8x1x256xf32>
    %8 = vector.broadcast %4 : vector<1x64x1xf32> to vector<8x64x256xf32>
    %9 = vector.broadcast %7 : vector<8x1x256xf32> to vector<8x64x256xf32>
    %10 = arith.mulf %8, %9 : vector<8x64x256xf32>
    %11 = vector.extract_strided_slice %1 {offsets = [1, 0], sizes = [1, 64], strides = [1, 1]} : vector<4x64xf32> to vector<1x64xf32>
    %12 = vector.shape_cast %11 : vector<1x64xf32> to vector<64xf32>
    %13 = vector.shape_cast %12 : vector<64xf32> to vector<1x64x1xf32>
    %14 = vector.extract_strided_slice %0 {offsets = [0, 1, 0], sizes = [8, 1, 256], strides = [1, 1, 1]} : vector<8x4x256xf32> to vector<8x1x256xf32>
    %15 = vector.shape_cast %14 : vector<8x1x256xf32> to vector<8x256xf32>
    %16 = vector.shape_cast %15 : vector<8x256xf32> to vector<8x1x256xf32>
    %17 = vector.broadcast %13 : vector<1x64x1xf32> to vector<8x64x256xf32>
    %18 = vector.broadcast %16 : vector<8x1x256xf32> to vector<8x64x256xf32>
    %19 = arith.mulf %17, %18 : vector<8x64x256xf32>
    %20 = arith.addf %10, %19 : vector<8x64x256xf32>
    %21 = vector.extract_strided_slice %1 {offsets = [2, 0], sizes = [1, 64], strides = [1, 1]} : vector<4x64xf32> to vector<1x64xf32>
    %22 = vector.shape_cast %21 : vector<1x64xf32> to vector<64xf32>
    %23 = vector.shape_cast %22 : vector<64xf32> to vector<1x64x1xf32>
    %24 = vector.extract_strided_slice %0 {offsets = [0, 2, 0], sizes = [8, 1, 256], strides = [1, 1, 1]} : vector<8x4x256xf32> to vector<8x1x256xf32>
    %25 = vector.shape_cast %24 : vector<8x1x256xf32> to vector<8x256xf32>
    %26 = vector.shape_cast %25 : vector<8x256xf32> to vector<8x1x256xf32>
    %27 = vector.broadcast %23 : vector<1x64x1xf32> to vector<8x64x256xf32>
    %28 = vector.broadcast %26 : vector<8x1x256xf32> to vector<8x64x256xf32>
    %29 = arith.mulf %27, %28 : vector<8x64x256xf32>
    %30 = arith.addf %20, %29 : vector<8x64x256xf32>
    %31 = vector.extract_strided_slice %1 {offsets = [3, 0], sizes = [1, 64], strides = [1, 1]} : vector<4x64xf32> to vector<1x64xf32>
    %32 = vector.shape_cast %31 : vector<1x64xf32> to vector<64xf32>
    %33 = vector.shape_cast %32 : vector<64xf32> to vector<1x64x1xf32>
    %34 = vector.extract_strided_slice %0 {offsets = [0, 3, 0], sizes = [8, 1, 256], strides = [1, 1, 1]} : vector<8x4x256xf32> to vector<8x1x256xf32>
    %35 = vector.shape_cast %34 : vector<8x1x256xf32> to vector<8x256xf32>
    %36 = vector.shape_cast %35 : vector<8x256xf32> to vector<8x1x256xf32>
    %37 = vector.broadcast %33 : vector<1x64x1xf32> to vector<8x64x256xf32>
    %38 = vector.broadcast %36 : vector<8x1x256xf32> to vector<8x64x256xf32>
    %39 = arith.mulf %37, %38 : vector<8x64x256xf32>
    %40 = arith.addf %30, %39 : vector<8x64x256xf32>
    %c0_4 = arith.constant 0 : index
    %c0_5 = arith.constant 0 : index
    %41 = vector.load %arg3[%c0_4, %c0_5] : memref<64x1xf32, #tpu.memory_space<vmem>>, vector<64x1xf32>
    %42 = vector.shape_cast %41 : vector<64x1xf32> to vector<1x64x1xf32>
    %43 = vector.broadcast %42 : vector<1x64x1xf32> to vector<8x64x256xf32>
    %44 = arith.addf %40, %43 : vector<8x64x256xf32>
    %cst = arith.constant 0.000000e+00 : f32
    %45 = vector.broadcast %cst : f32 to vector<8x64x256xf32>
    %46 = arith.maximumf %44, %45 : vector<8x64x256xf32>
    %cst_6 = arith.constant dense<0.000000e+00> : vector<8x64xf32>
    %47 = vector.multi_reduction <add>, %46, %cst_6 [2] : vector<8x64x256xf32> to vector<8x64xf32>
    %cst_7 = arith.constant 2.560000e+02 : f32
    %48 = vector.broadcast %cst_7 : f32 to vector<8x64xf32>
    %49 = arith.divf %47, %48 : vector<8x64xf32>
    %50 = vector.extract_strided_slice %49 {offsets = [0, 0], sizes = [8, 32], strides = [1, 1]} : vector<8x64xf32> to vector<8x32xf32>
    %51 = vector.extract_strided_slice %49 {offsets = [0, 32], sizes = [8, 32], strides = [1, 1]} : vector<8x64xf32> to vector<8x32xf32>
    %c0_8 = arith.constant 0 : index
    %c0_9 = arith.constant 0 : index
    %52 = vector.load %arg4[%c0_8, %c0_9] : memref<32x10xf32, #tpu.memory_space<vmem>>, vector<32x10xf32>
    %c0_10 = arith.constant 0 : index
    %c0_11 = arith.constant 0 : index
    %53 = vector.load %arg5[%c0_10, %c0_11] : memref<1x10xf32, #tpu.memory_space<vmem>>, vector<1x10xf32>
    %cst_12 = arith.constant dense<0.000000e+00> : vector<8x10xf32>
    %54 = tpu.matmul %50, %52, %cst_12 {dimension_numbers = #tpu.dot_dimension_numbers<[1], [0], [0], [1], [0, 0, 1, 1], [], []>} : vector<8x32xf32>, vector<32x10xf32>, vector<8x10xf32> -> vector<8x10xf32>
    %55 = vector.broadcast %53 : vector<1x10xf32> to vector<8x10xf32>
    %56 = arith.addf %54, %55 : vector<8x10xf32>
    %cst_13 = arith.constant dense<0.000000e+00> : vector<8x10xf32>
    %57 = tpu.matmul %51, %52, %cst_13 {dimension_numbers = #tpu.dot_dimension_numbers<[1], [0], [0], [1], [0, 0, 1, 1], [], []>} : vector<8x32xf32>, vector<32x10xf32>, vector<8x10xf32> -> vector<8x10xf32>
    %58 = vector.broadcast %53 : vector<1x10xf32> to vector<8x10xf32>
    %59 = arith.addf %57, %58 : vector<8x10xf32>
    %60 = arith.addf %56, %59 : vector<8x10xf32>
    %cst_14 = arith.constant 5.000000e-01 : f32
    %61 = vector.broadcast %cst_14 : f32 to vector<8x10xf32>
    %62 = arith.mulf %61, %60 : vector<8x10xf32>
    %c0_15 = arith.constant 0 : index
    %c0_16 = arith.constant 0 : index
    %63 = vector.load %arg6[%c0_15, %c0_16] : memref<8x10xf32, #tpu.memory_space<vmem>>, vector<8x10xf32>
    tpu.vector_store %arg6[%c0_15, %c0_16], %62 {strides = array<i32>} : memref<8x10xf32, #tpu.memory_space<vmem>>, vector<8x10xf32>,
    %cst_17 = arith.constant dense<0xFF800000> : vector<8xf32>
    %64 = vector.multi_reduction <maximumf>, %56, %cst_17 [1] : vector<8x10xf32> to vector<8xf32>
    %65 = vector.shape_cast %64 : vector<8xf32> to vector<8x1xf32>
    %66 = vector.broadcast %65 : vector<8x1xf32> to vector<8x10xf32>
    %67 = arith.subf %56, %66 : vector<8x10xf32>
    %68 = math.exp %67 : vector<8x10xf32>
    %cst_18 = arith.constant dense<0.000000e+00> : vector<8xf32>
    %69 = vector.multi_reduction <add>, %68, %cst_18 [1] : vector<8x10xf32> to vector<8xf32>
    %70 = vector.shape_cast %69 : vector<8xf32> to vector<8x1xf32>
    %71 = tpu.reciprocal %70 {approx = true} : vector<8x1xf32> -> vector<8x1xf32>
    %72 = vector.broadcast %71 : vector<8x1xf32> to vector<8x10xf32>
    %73 = arith.mulf %68, %72 : vector<8x10xf32>
    %cst_19 = arith.constant dense<0xFF800000> : vector<8xf32>
    %74 = vector.multi_reduction <maximumf>, %59, %cst_19 [1] : vector<8x10xf32> to vector<8xf32>
    %75 = vector.shape_cast %74 : vector<8xf32> to vector<8x1xf32>
    %76 = vector.broadcast %75 : vector<8x1xf32> to vector<8x10xf32>
    %77 = arith.subf %59, %76 : vector<8x10xf32>
    %78 = math.exp %77 : vector<8x10xf32>
    %cst_20 = arith.constant dense<0.000000e+00> : vector<8xf32>
    %79 = vector.multi_reduction <add>, %78, %cst_20 [1] : vector<8x10xf32> to vector<8xf32>
    %80 = vector.shape_cast %79 : vector<8xf32> to vector<8x1xf32>
    %81 = tpu.reciprocal %80 {approx = true} : vector<8x1xf32> -> vector<8x1xf32>
    %82 = vector.broadcast %81 : vector<8x1xf32> to vector<8x10xf32>
    %83 = arith.mulf %78, %82 : vector<8x10xf32>
    %84 = arith.addf %73, %83 : vector<8x10xf32>
    %cst_21 = arith.constant 5.000000e-01 : f32
    %85 = vector.broadcast %cst_21 : f32 to vector<8x10xf32>
    %86 = arith.mulf %85, %84 : vector<8x10xf32>
    %c0_22 = arith.constant 0 : index
    %c0_23 = arith.constant 0 : index
    %87 = vector.load %arg7[%c0_22, %c0_23] : memref<8x10xf32, #tpu.memory_space<vmem>>, vector<8x10xf32>
    tpu.vector_store %arg7[%c0_22, %c0_23], %86 {strides = array<i32>} : memref<8x10xf32, #tpu.memory_space<vmem>>, vector<8x10xf32>,
    return
  }
  func.func @transform_0(%arg0: i32) -> (i32, i32, i32) {
    %c0_i32 = arith.constant 0 : i32
    %c0_i32_0 = arith.constant 0 : i32
    %c0_i32_1 = arith.constant 0 : i32
    return %arg0, %c0_i32, %c0_i32_0 : i32, i32, i32
  }
  func.func @transform_1(%arg0: i32) -> (i32, i32) {
    %c0_i32 = arith.constant 0 : i32
    %c0_i32_0 = arith.constant 0 : i32
    %c0_i32_1 = arith.constant 0 : i32
    return %c0_i32, %c0_i32_0 : i32, i32
  }
  func.func @transform_2(%arg0: i32) -> (i32, i32) {
    %c0_i32 = arith.constant 0 : i32
    %c0_i32_0 = arith.constant 0 : i32
    %c0_i32_1 = arith.constant 0 : i32
    return %c0_i32, %c0_i32_0 : i32, i32
  }
  func.func @transform_3(%arg0: i32) -> (i32, i32) {
    %c0_i32 = arith.constant 0 : i32
    %c0_i32_0 = arith.constant 0 : i32
    %c0_i32_1 = arith.constant 0 : i32
    return %c0_i32, %c0_i32_0 : i32, i32
  }
  func.func @transform_4(%arg0: i32) -> (i32, i32) {
    %c0_i32 = arith.constant 0 : i32
    %c0_i32_0 = arith.constant 0 : i32
    %c0_i32_1 = arith.constant 0 : i32
    return %c0_i32, %c0_i32_0 : i32, i32
  }
  func.func @transform_5(%arg0: i32) -> (i32, i32) {
    %c0_i32 = arith.constant 0 : i32
    %c0_i32_0 = arith.constant 0 : i32
    return %arg0, %c0_i32 : i32, i32
  }
  func.func @transform_6(%arg0: i32) -> (i32, i32) {
    %c0_i32 = arith.constant 0 : i32
    %c0_i32_0 = arith.constant 0 : i32
    return %arg0, %c0_i32 : i32, i32
  }
}

</mosaic_0001>

<llo_original>
// kernel: tpu_custom_call.1
$region0: #{tpu_custom_call.1}
  #allocation0 [shape = 'u32[]', space=smem, size = 0x4, offset = 0x4, fixed_abs, tag = 'smem constant byte address 0x4 - core index']
  #allocation1 [shape = 'u32[144,128]{1,0:T(1,128)}', space=vmem, size = 0x12000, scoped, tag = 'internal scratch']
  %s0 = inlined_call_operand.vmem [shape: f32[8,4,256], index: 0, kind: input, shape index: {}]
  %s1 = inlined_call_operand.vmem [shape: f32[4,64], index: 1, kind: input, shape index: {}]
  %s2 = inlined_call_operand.vmem [shape: f32[64,1], index: 2, kind: input, shape index: {}]
  %s3 = inlined_call_operand.vmem [shape: f32[32,10], index: 3, kind: input, shape index: {}]
  %s4 = inlined_call_operand.vmem [shape: f32[1,10], index: 4, kind: input, shape index: {}]
  %s5 = inlined_call_operand.hbm [shape: f32[8,10], index: 5, kind: output, shape index: {0}]
  %s6 = inlined_call_operand.hbm [shape: f32[8,10], index: 6, kind: output, shape index: {1}]
  %7 = xla_tuple %s5, %s6
  %s8 = sld [smem:[#allocation0]]
  $region38: #{tpu_custom_call.1} parent=0
    _
  %s10 = ssub.s32 1, %s8
  %s11 = scalar_select 0, %s10, %s8
  $region1: #{tpu_custom_call.1} parent=0
    #allocation2 [shape = 'u8[4096]{0}', space=vmem, size = 0x1000, scoped, tag = 'output window, operand 0, single buffered']
    #allocation3 [shape = 's32[1]{0}', space=sflag, size = 0x4, scoped, tag = 'scoped memory for tpu_custom_call.1']
    #allocation4 [shape = 'u8[4096]{0}', space=vmem, size = 0x1000, scoped, tag = 'output window, operand 1, single buffered']
    #allocation5 [shape = 's32[1]{0}', space=sflag, size = 0x4, scoped, tag = 'scoped memory for tpu_custom_call.1']
    %12 = vsyncpa [#allocation3], 0
    %13 = vsyncpa [#allocation5], 0
    // Predicated region
    $region2: #{tpu_custom_call.1} parent=1 // pred_check
      _
    $region3: #{tpu_custom_call.1} parent=1 // pred_check_branch
      %15 = sbr.rel (0) target = $region5
    $region4: #{tpu_custom_call.1} parent=1 // pred_region
      _
    $region5: #{tpu_custom_call.1} parent=1 // pred_fallthru
      _
    // Predicated region
    $region6: #{tpu_custom_call.1} parent=1 // pred_check
      _
    $region7: #{tpu_custom_call.1} parent=1 // pred_check_branch
      %17 = sbr.rel (0) target = $region9
    $region8: #{tpu_custom_call.1} parent=1 // pred_region
      _
    $region9: #{tpu_custom_call.1} parent=1 // pred_fallthru
      _
    // Predicated region
    $region10: #{tpu_custom_call.1} parent=1 // pred_check
      _
    $region11: #{tpu_custom_call.1} parent=1 // pred_check_branch
      %19 = sbr.rel (0) target = $region13
    $region12: #{tpu_custom_call.1} parent=1 // pred_region
      _
    $region13: #{tpu_custom_call.1} parent=1 // pred_fallthru
      _
    // Predicated region
    $region14: #{tpu_custom_call.1} parent=1 // pred_check
      _
    $region15: #{tpu_custom_call.1} parent=1 // pred_check_branch
      %21 = sbr.rel (0) target = $region17
    $region16: #{tpu_custom_call.1} parent=1 // pred_region
      _
    $region17: #{tpu_custom_call.1} parent=1 // pred_fallthru
      _
    // Predicated region
    $region18: #{tpu_custom_call.1} parent=1 // pred_check
      _
    $region19: #{tpu_custom_call.1} parent=1 // pred_check_branch
      %23 = sbr.rel (0) target = $region21
    $region20: #{tpu_custom_call.1} parent=1 // pred_region
      _
    $region21: #{tpu_custom_call.1} parent=1 // pred_fallthru
      _
    %v24 = vld [vmem:[%s0] sm:$0xff]
    %v25 = vld [vmem:[%s0 + $0x8] sm:$0xff]
    %v26 = vld [vmem:[%s0 + $0x10] sm:$0xff]
    %v27 = vld [vmem:[%s0 + $0x18] sm:$0xff]
    %v28 = vld [vmem:[%s0 + $0x20] sm:$0xff]
    %v29 = vld [vmem:[%s0 + $0x28] sm:$0xff]
    %v30 = vld [vmem:[%s0 + $0x30] sm:$0xff]
    %v31 = vld [vmem:[%s0 + $0x38] sm:$0xff]
    %v32 = vld [vmem:[%s1] sm:$0xf]
    %v33 = vlaneseq
    %v34 = vshrl.u32 %v33, 7
    %v35 = vsub.s32 0, %v34
    %v36 = vrot.slane %v32, %v35
    %38 = vbcast.lane.b32.xlu0 %v36, 256
    %v39 = vpop.permute.xlu0 %38
    %s41 = sor.u32 256, 8
    %42 = vbcast.lane.b32.xlu0 %v36, %s41
    %v43 = vpop.permute.xlu0 %42
    %s45 = sor.u32 256, 16
    %46 = vbcast.lane.b32.xlu0 %v36, %s45
    %v47 = vpop.permute.xlu0 %46
    %s49 = sor.u32 256, 24
    %50 = vbcast.lane.b32.xlu0 %v36, %s49
    %v51 = vpop.permute.xlu0 %50
    %s53 = sor.u32 256, 32
    %54 = vbcast.lane.b32.xlu0 %v36, %s53
    %v55 = vpop.permute.xlu0 %54
    %s57 = sor.u32 256, 40
    %58 = vbcast.lane.b32.xlu0 %v36, %s57
    %v59 = vpop.permute.xlu0 %58
    %s61 = sor.u32 256, 48
    %62 = vbcast.lane.b32.xlu0 %v36, %s61
    %v63 = vpop.permute.xlu0 %62
    %s65 = sor.u32 256, 56
    %66 = vbcast.lane.b32.xlu0 %v36, %s65
    %v67 = vpop.permute.xlu0 %66
    %v76 = vlaneseq
    %v77 = vshrl.u32 %v76, 7
    %v78 = vsub.s32 0, %v77
    %v79 = vrot.slane %v24, %v78
    %v80 = vlaneseq
    %v81 = vshrl.u32 %v80, 7
    %v82 = vsub.s32 4, %v81
    %v83 = vrot.slane %v24, %v82
    %v84 = vlaneseq
    %v85 = vshrl.u32 %v84, 7
    %v86 = vsub.s32 0, %v85
    %v87 = vrot.slane %v25, %v86
    %v88 = vlaneseq
    %v89 = vshrl.u32 %v88, 7
    %v90 = vsub.s32 4, %v89
    %v91 = vrot.slane %v25, %v90
    %v92 = vlaneseq
    %v93 = vshrl.u32 %v92, 7
    %v94 = vsub.s32 0, %v93
    %v95 = vrot.slane %v26, %v94
    %v96 = vlaneseq
    %v97 = vshrl.u32 %v96, 7
    %v98 = vsub.s32 4, %v97
    %v99 = vrot.slane %v26, %v98
    %v100 = vlaneseq
    %v101 = vshrl.u32 %v100, 7
    %v102 = vsub.s32 0, %v101
    %v103 = vrot.slane %v27, %v102
    %v104 = vlaneseq
    %v105 = vshrl.u32 %v104, 7
    %v106 = vsub.s32 4, %v105
    %v107 = vrot.slane %v27, %v106
    %v108 = vlaneseq
    %v109 = vshrl.u32 %v108, 7
    %v110 = vsub.s32 0, %v109
    %v111 = vrot.slane %v28, %v110
    %v112 = vlaneseq
    %v113 = vshrl.u32 %v112, 7
    %v114 = vsub.s32 4, %v113
    %v115 = vrot.slane %v28, %v114
    %v116 = vlaneseq
    %v117 = vshrl.u32 %v116, 7
    %v118 = vsub.s32 0, %v117
    %v119 = vrot.slane %v29, %v118
    %v120 = vlaneseq
    %v121 = vshrl.u32 %v120, 7
    %v122 = vsub.s32 4, %v121
    %v123 = vrot.slane %v29, %v122
    %v124 = vlaneseq
    %v125 = vshrl.u32 %v124, 7
    %v126 = vsub.s32 0, %v125
    %v127 = vrot.slane %v30, %v126
    %v128 = vlaneseq
    %v129 = vshrl.u32 %v128, 7
    %v130 = vsub.s32 4, %v129
    %v131 = vrot.slane %v30, %v130
    %v132 = vlaneseq
    %v133 = vshrl.u32 %v132, 7
    %v134 = vsub.s32 0, %v133
    %v135 = vrot.slane %v31, %v134
    %v136 = vlaneseq
    %v137 = vshrl.u32 %v136, 7
    %v138 = vsub.s32 4, %v137
    %v139 = vrot.slane %v31, %v138
    %v156 = vlaneseq
    %v157 = vshrl.u32 %v156, 7
    %v158 = vsub.s32 0, %v157
    %v159 = vrot.slane %v79, %v158
    %v160 = vlaneseq
    %v161 = vshrl.u32 %v160, 7
    %v162 = vsub.s32 0, %v161
    %v163 = vrot.slane %v83, %v162
    %v164 = vlaneseq
    %v165 = vshrl.u32 %v164, 7
    %v166 = vsub.s32 0, %v165
    %v167 = vrot.slane %v87, %v166
    %v168 = vlaneseq
    %v169 = vshrl.u32 %v168, 7
    %v170 = vsub.s32 0, %v169
    %v171 = vrot.slane %v91, %v170
    %v172 = vlaneseq
    %v173 = vshrl.u32 %v172, 7
    %v174 = vsub.s32 0, %v173
    %v175 = vrot.slane %v95, %v174
    %v176 = vlaneseq
    %v177 = vshrl.u32 %v176, 7
    %v178 = vsub.s32 0, %v177
    %v179 = vrot.slane %v99, %v178
    %v180 = vlaneseq
    %v181 = vshrl.u32 %v180, 7
    %v182 = vsub.s32 0, %v181
    %v183 = vrot.slane %v103, %v182
    %v184 = vlaneseq
    %v185 = vshrl.u32 %v184, 7
    %v186 = vsub.s32 0, %v185
    %v187 = vrot.slane %v107, %v186
    %v188 = vlaneseq
    %v189 = vshrl.u32 %v188, 7
    %v190 = vsub.s32 0, %v189
    %v191 = vrot.slane %v111, %v190
    %v192 = vlaneseq
    %v193 = vshrl.u32 %v192, 7
    %v194 = vsub.s32 0, %v193
    %v195 = vrot.slane %v115, %v194
    %v196 = vlaneseq
    %v197 = vshrl.u32 %v196, 7
    %v198 = vsub.s32 0, %v197
    %v199 = vrot.slane %v119, %v198
    %v200 = vlaneseq
    %v201 = vshrl.u32 %v200, 7
    %v202 = vsub.s32 0, %v201
    %v203 = vrot.slane %v123, %v202
    %v204 = vlaneseq
    %v205 = vshrl.u32 %v204, 7
    %v206 = vsub.s32 0, %v205
    %v207 = vrot.slane %v127, %v206
    %v208 = vlaneseq
    %v209 = vshrl.u32 %v208, 7
    %v210 = vsub.s32 0, %v209
    %v211 = vrot.slane %v131, %v210
    %v212 = vlaneseq
    %v213 = vshrl.u32 %v212, 7
    %v214 = vsub.s32 0, %v213
    %v215 = vrot.slane %v135, %v214
    %v216 = vlaneseq
    %v217 = vshrl.u32 %v216, 7
    %v218 = vsub.s32 0, %v217
    %v219 = vrot.slane %v139, %v218
    %v220 = vmul.f32 %v39, %v159
    %v221 = vmul.f32 %v39, %v163
    %v222 = vmul.f32 %v43, %v159
    %v223 = vmul.f32 %v43, %v163
    %v224 = vmul.f32 %v47, %v159
    %v225 = vmul.f32 %v47, %v163
    %v226 = vmul.f32 %v51, %v159
    %v227 = vmul.f32 %v51, %v163
    %v228 = vmul.f32 %v55, %v159
    %v229 = vmul.f32 %v55, %v163
    %v230 = vmul.f32 %v59, %v159
    %v231 = vmul.f32 %v59, %v163
    %v232 = vmul.f32 %v63, %v159
    %v233 = vmul.f32 %v63, %v163
    %v234 = vmul.f32 %v67, %v159
    %v235 = vmul.f32 %v67, %v163
    %v236 = vmul.f32 %v39, %v167
    %v237 = vmul.f32 %v39, %v171
    %v238 = vmul.f32 %v43, %v167
    %v239 = vmul.f32 %v43, %v171
    %v240 = vmul.f32 %v47, %v167
    %v241 = vmul.f32 %v47, %v171
    %v242 = vmul.f32 %v51, %v167
    %v243 = vmul.f32 %v51, %v171
    %v244 = vmul.f32 %v55, %v167
    %v245 = vmul.f32 %v55, %v171
    %v246 = vmul.f32 %v59, %v167
    %v247 = vmul.f32 %v59, %v171
    %v248 = vmul.f32 %v63, %v167
    %v249 = vmul.f32 %v63, %v171
    %v250 = vmul.f32 %v67, %v167
    %v251 = vmul.f32 %v67, %v171
    %v252 = vmul.f32 %v39, %v175
    %v253 = vmul.f32 %v39, %v179
    %v254 = vmul.f32 %v43, %v175
    %v255 = vmul.f32 %v43, %v179
    %v256 = vmul.f32 %v47, %v175
    %v257 = vmul.f32 %v47, %v179
    %v258 = vmul.f32 %v51, %v175
    %v259 = vmul.f32 %v51, %v179
    %v260 = vmul.f32 %v55, %v175
    %v261 = vmul.f32 %v55, %v179
    %v262 = vmul.f32 %v59, %v175
    %v263 = vmul.f32 %v59, %v179
    %v264 = vmul.f32 %v63, %v175
    %v265 = vmul.f32 %v63, %v179
    %v266 = vmul.f32 %v67, %v175
    %v267 = vmul.f32 %v67, %v179
    %v268 = vmul.f32 %v39, %v183
    %v269 = vmul.f32 %v39, %v187
    %v270 = vmul.f32 %v43, %v183
    %v271 = vmul.f32 %v43, %v187
    %v272 = vmul.f32 %v47, %v183
    %v273 = vmul.f32 %v47, %v187
    %v274 = vmul.f32 %v51, %v183
    %v275 = vmul.f32 %v51, %v187
    %v276 = vmul.f32 %v55, %v183
    %v277 = vmul.f32 %v55, %v187
    %v278 = vmul.f32 %v59, %v183
    %v279 = vmul.f32 %v59, %v187
    %v280 = vmul.f32 %v63, %v183
    %v281 = vmul.f32 %v63, %v187
    %v282 = vmul.f32 %v67, %v183
    %v283 = vmul.f32 %v67, %v187
    %v284 = vmul.f32 %v39, %v191
    %v285 = vmul.f32 %v39, %v195
    %v286 = vmul.f32 %v43, %v191
    %v287 = vmul.f32 %v43, %v195
    %v288 = vmul.f32 %v47, %v191
    %v289 = vmul.f32 %v47, %v195
    %v290 = vmul.f32 %v51, %v191
    %v291 = vmul.f32 %v51, %v195
    %v292 = vmul.f32 %v55, %v191
    %v293 = vmul.f32 %v55, %v195
    %v294 = vmul.f32 %v59, %v191
    %v295 = vmul.f32 %v59, %v195
    %v296 = vmul.f32 %v63, %v191
    %v297 = vmul.f32 %v63, %v195
    %v298 = vmul.f32 %v67, %v191
    %v299 = vmul.f32 %v67, %v195
    %v300 = vmul.f32 %v39, %v199
    %v301 = vmul.f32 %v39, %v203
    %v302 = vmul.f32 %v43, %v199
    %v303 = vmul.f32 %v43, %v203
    %v304 = vmul.f32 %v47, %v199
    %v305 = vmul.f32 %v47, %v203
    %v306 = vmul.f32 %v51, %v199
    %v307 = vmul.f32 %v51, %v203
    %v308 = vmul.f32 %v55, %v199
    %v309 = vmul.f32 %v55, %v203
    %v310 = vmul.f32 %v59, %v199
    %v311 = vmul.f32 %v59, %v203
    %v312 = vmul.f32 %v63, %v199
    %v313 = vmul.f32 %v63, %v203
    %v314 = vmul.f32 %v67, %v199
    %v315 = vmul.f32 %v67, %v203
    %v316 = vmul.f32 %v39, %v207
    %v317 = vmul.f32 %v39, %v211
    %v318 = vmul.f32 %v43, %v207
    %v319 = vmul.f32 %v43, %v211
    %v320 = vmul.f32 %v47, %v207
    %v321 = vmul.f32 %v47, %v211
    %v322 = vmul.f32 %v51, %v207
    %v323 = vmul.f32 %v51, %v211
    %v324 = vmul.f32 %v55, %v207
    %v325 = vmul.f32 %v55, %v211
    %v326 = vmul.f32 %v59, %v207
    %v327 = vmul.f32 %v59, %v211
    %v328 = vmul.f32 %v63, %v207
    %v329 = vmul.f32 %v63, %v211
    %v330 = vmul.f32 %v67, %v207
    %v331 = vmul.f32 %v67, %v211
    %v332 = vmul.f32 %v39, %v215
    %v333 = vmul.f32 %v39, %v219
    %v334 = vmul.f32 %v43, %v215
    %v335 = vmul.f32 %v43, %v219
    %v336 = vmul.f32 %v47, %v215
    %v337 = vmul.f32 %v47, %v219
    %v338 = vmul.f32 %v51, %v215
    %v339 = vmul.f32 %v51, %v219
    %v340 = vmul.f32 %v55, %v215
    %v341 = vmul.f32 %v55, %v219
    %v342 = vmul.f32 %v59, %v215
    %v343 = vmul.f32 %v59, %v219
    %v344 = vmul.f32 %v63, %v215
    %v345 = vmul.f32 %v63, %v219
    %v346 = vmul.f32 %v67, %v215
    %v347 = vmul.f32 %v67, %v219
    %v348 = vlaneseq
    %v349 = vshrl.u32 %v348, 7
    %v350 = vsub.s32 1, %v349
    %v351 = vrot.slane %v32, %v350
    %353 = vbcast.lane.b32.xlu0 %v351, 256
    %v354 = vpop.permute.xlu0 %353
    %s356 = sor.u32 256, 8
    %357 = vbcast.lane.b32.xlu0 %v351, %s356
    %v358 = vpop.permute.xlu0 %357
    %s360 = sor.u32 256, 16
    %361 = vbcast.lane.b32.xlu0 %v351, %s360
    %v362 = vpop.permute.xlu0 %361
    %s364 = sor.u32 256, 24
    %365 = vbcast.lane.b32.xlu0 %v351, %s364
    %v366 = vpop.permute.xlu0 %365
    %s368 = sor.u32 256, 32
    %369 = vbcast.lane.b32.xlu0 %v351, %s368
    %v370 = vpop.permute.xlu0 %369
    %s372 = sor.u32 256, 40
    %373 = vbcast.lane.b32.xlu0 %v351, %s372
    %v374 = vpop.permute.xlu0 %373
    %s376 = sor.u32 256, 48
    %377 = vbcast.lane.b32.xlu0 %v351, %s376
    %v378 = vpop.permute.xlu0 %377
    %s380 = sor.u32 256, 56
    %381 = vbcast.lane.b32.xlu0 %v351, %s380
    %v382 = vpop.permute.xlu0 %381
    %v383 = vlaneseq
    %v384 = vshrl.u32 %v383, 7
    %v385 = vsub.s32 1, %v384
    %v386 = vrot.slane %v24, %v385
    %v387 = vlaneseq
    %v388 = vshrl.u32 %v387, 7
    %v389 = vsub.s32 5, %v388
    %v390 = vrot.slane %v24, %v389
    %v391 = vlaneseq
    %v392 = vshrl.u32 %v391, 7
    %v393 = vsub.s32 1, %v392
    %v394 = vrot.slane %v25, %v393
    %v395 = vlaneseq
    %v396 = vshrl.u32 %v395, 7
    %v397 = vsub.s32 5, %v396
    %v398 = vrot.slane %v25, %v397
    %v399 = vlaneseq
    %v400 = vshrl.u32 %v399, 7
    %v401 = vsub.s32 1, %v400
    %v402 = vrot.slane %v26, %v401
    %v403 = vlaneseq
    %v404 = vshrl.u32 %v403, 7
    %v405 = vsub.s32 5, %v404
    %v406 = vrot.slane %v26, %v405
    %v407 = vlaneseq
    %v408 = vshrl.u32 %v407, 7
    %v409 = vsub.s32 1, %v408
    %v410 = vrot.slane %v27, %v409
    %v411 = vlaneseq
    %v412 = vshrl.u32 %v411, 7
    %v413 = vsub.s32 5, %v412
    %v414 = vrot.slane %v27, %v413
    %v415 = vlaneseq
    %v416 = vshrl.u32 %v415, 7
    %v417 = vsub.s32 1, %v416
    %v418 = vrot.slane %v28, %v417
    %v419 = vlaneseq
    %v420 = vshrl.u32 %v419, 7
    %v421 = vsub.s32 5, %v420
    %v422 = vrot.slane %v28, %v421
    %v423 = vlaneseq
    %v424 = vshrl.u32 %v423, 7
    %v425 = vsub.s32 1, %v424
    %v426 = vrot.slane %v29, %v425
    %v427 = vlaneseq
    %v428 = vshrl.u32 %v427, 7
    %v429 = vsub.s32 5, %v428
    %v430 = vrot.slane %v29, %v429
    %v431 = vlaneseq
    %v432 = vshrl.u32 %v431, 7
    %v433 = vsub.s32 1, %v432
    %v434 = vrot.slane %v30, %v433
    %v435 = vlaneseq
    %v436 = vshrl.u32 %v435, 7
    %v437 = vsub.s32 5, %v436
    %v438 = vrot.slane %v30, %v437
    %v439 = vlaneseq
    %v440 = vshrl.u32 %v439, 7
    %v441 = vsub.s32 1, %v440
    %v442 = vrot.slane %v31, %v441
    %v443 = vlaneseq
    %v444 = vshrl.u32 %v443, 7
    %v445 = vsub.s32 5, %v444
    %v446 = vrot.slane %v31, %v445
    %v463 = vlaneseq
    %v464 = vshrl.u32 %v463, 7
    %v465 = vsub.s32 1, %v464
    %v466 = vrot.slane %v386, %v465
    %v467 = vlaneseq
    %v468 = vshrl.u32 %v467, 7
    %v469 = vsub.s32 1, %v468
    %v470 = vrot.slane %v390, %v469
    %v471 = vlaneseq
    %v472 = vshrl.u32 %v471, 7
    %v473 = vsub.s32 1, %v472
    %v474 = vrot.slane %v394, %v473
    %v475 = vlaneseq
    %v476 = vshrl.u32 %v475, 7
    %v477 = vsub.s32 1, %v476
    %v478 = vrot.slane %v398, %v477
    %v479 = vlaneseq
    %v480 = vshrl.u32 %v479, 7
    %v481 = vsub.s32 1, %v480
    %v482 = vrot.slane %v402, %v481
    %v483 = vlaneseq
    %v484 = vshrl.u32 %v483, 7
    %v485 = vsub.s32 1, %v484
    %v486 = vrot.slane %v406, %v485
    %v487 = vlaneseq
    %v488 = vshrl.u32 %v487, 7
    %v489 = vsub.s32 1, %v488
    %v490 = vrot.slane %v410, %v489
    %v491 = vlaneseq
    %v492 = vshrl.u32 %v491, 7
    %v493 = vsub.s32 1, %v492
    %v494 = vrot.slane %v414, %v493
    %v495 = vlaneseq
    %v496 = vshrl.u32 %v495, 7
    %v497 = vsub.s32 1, %v496
    %v498 = vrot.slane %v418, %v497
    %v499 = vlaneseq
    %v500 = vshrl.u32 %v499, 7
    %v501 = vsub.s32 1, %v500
    %v502 = vrot.slane %v422, %v501
    %v503 = vlaneseq
    %v504 = vshrl.u32 %v503, 7
    %v505 = vsub.s32 1, %v504
    %v506 = vrot.slane %v426, %v505
    %v507 = vlaneseq
    %v508 = vshrl.u32 %v507, 7
    %v509 = vsub.s32 1, %v508
    %v510 = vrot.slane %v430, %v509
    %v511 = vlaneseq
    %v512 = vshrl.u32 %v511, 7
    %v513 = vsub.s32 1, %v512
    %v514 = vrot.slane %v434, %v513
    %v515 = vlaneseq
    %v516 = vshrl.u32 %v515, 7
    %v517 = vsub.s32 1, %v516
    %v518 = vrot.slane %v438, %v517
    %v519 = vlaneseq
    %v520 = vshrl.u32 %v519, 7
    %v521 = vsub.s32 1, %v520
    %v522 = vrot.slane %v442, %v521
    %v523 = vlaneseq
    %v524 = vshrl.u32 %v523, 7
    %v525 = vsub.s32 1, %v524
    %v526 = vrot.slane %v446, %v525
    %v527 = vmul.f32 %v354, %v466
    %v528 = vmul.f32 %v354, %v470
    %v529 = vmul.f32 %v358, %v466
    %v530 = vmul.f32 %v358, %v470
    %v531 = vmul.f32 %v362, %v466
    %v532 = vmul.f32 %v362, %v470
    %v533 = vmul.f32 %v366, %v466
    %v534 = vmul.f32 %v366, %v470
    %v535 = vmul.f32 %v370, %v466
    %v536 = vmul.f32 %v370, %v470
    %v537 = vmul.f32 %v374, %v466
    %v538 = vmul.f32 %v374, %v470
    %v539 = vmul.f32 %v378, %v466
    %v540 = vmul.f32 %v378, %v470
    %v541 = vmul.f32 %v382, %v466
    %v542 = vmul.f32 %v382, %v470
    %v543 = vmul.f32 %v354, %v474
    %v544 = vmul.f32 %v354, %v478
    %v545 = vmul.f32 %v358, %v474
    %v546 = vmul.f32 %v358, %v478
    %v547 = vmul.f32 %v362, %v474
    %v548 = vmul.f32 %v362, %v478
    %v549 = vmul.f32 %v366, %v474
    %v550 = vmul.f32 %v366, %v478
    %v551 = vmul.f32 %v370, %v474
    %v552 = vmul.f32 %v370, %v478
    %v553 = vmul.f32 %v374, %v474
    %v554 = vmul.f32 %v374, %v478
    %v555 = vmul.f32 %v378, %v474
    %v556 = vmul.f32 %v378, %v478
    %v557 = vmul.f32 %v382, %v474
    %v558 = vmul.f32 %v382, %v478
    %v559 = vmul.f32 %v354, %v482
    %v560 = vmul.f32 %v354, %v486
    %v561 = vmul.f32 %v358, %v482
    %v562 = vmul.f32 %v358, %v486
    %v563 = vmul.f32 %v362, %v482
    %v564 = vmul.f32 %v362, %v486
    %v565 = vmul.f32 %v366, %v482
    %v566 = vmul.f32 %v366, %v486
    %v567 = vmul.f32 %v370, %v482
    %v568 = vmul.f32 %v370, %v486
    %v569 = vmul.f32 %v374, %v482
    %v570 = vmul.f32 %v374, %v486
    %v571 = vmul.f32 %v378, %v482
    %v572 = vmul.f32 %v378, %v486
    %v573 = vmul.f32 %v382, %v482
    %v574 = vmul.f32 %v382, %v486
    %v575 = vmul.f32 %v354, %v490
    %v576 = vmul.f32 %v354, %v494
    %v577 = vmul.f32 %v358, %v490
    %v578 = vmul.f32 %v358, %v494
    %v579 = vmul.f32 %v362, %v490
    %v580 = vmul.f32 %v362, %v494
    %v581 = vmul.f32 %v366, %v490
    %v582 = vmul.f32 %v366, %v494
    %v583 = vmul.f32 %v370, %v490
    %v584 = vmul.f32 %v370, %v494
    %v585 = vmul.f32 %v374, %v490
    %v586 = vmul.f32 %v374, %v494
    %v587 = vmul.f32 %v378, %v490
    %v588 = vmul.f32 %v378, %v494
    %v589 = vmul.f32 %v382, %v490
    %v590 = vmul.f32 %v382, %v494
    %v591 = vmul.f32 %v354, %v498
    %v592 = vmul.f32 %v354, %v502
    %v593 = vmul.f32 %v358, %v498
    %v594 = vmul.f32 %v358, %v502
    %v595 = vmul.f32 %v362, %v498
    %v596 = vmul.f32 %v362, %v502
    %v597 = vmul.f32 %v366, %v498
    %v598 = vmul.f32 %v366, %v502
    %v599 = vmul.f32 %v370, %v498
    %v600 = vmul.f32 %v370, %v502
    %v601 = vmul.f32 %v374, %v498
    %v602 = vmul.f32 %v374, %v502
    %v603 = vmul.f32 %v378, %v498
    %v604 = vmul.f32 %v378, %v502
    %v605 = vmul.f32 %v382, %v498
    %v606 = vmul.f32 %v382, %v502
    %v607 = vmul.f32 %v354, %v506
    %v608 = vmul.f32 %v354, %v510
    %v609 = vmul.f32 %v358, %v506
    %v610 = vmul.f32 %v358, %v510
    %v611 = vmul.f32 %v362, %v506
    %v612 = vmul.f32 %v362, %v510
    %v613 = vmul.f32 %v366, %v506
    %v614 = vmul.f32 %v366, %v510
    %v615 = vmul.f32 %v370, %v506
    %v616 = vmul.f32 %v370, %v510
    %v617 = vmul.f32 %v374, %v506
    %v618 = vmul.f32 %v374, %v510
    %v619 = vmul.f32 %v378, %v506
    %v620 = vmul.f32 %v378, %v510
    %v621 = vmul.f32 %v382, %v506
    %v622 = vmul.f32 %v382, %v510
    %v623 = vmul.f32 %v354, %v514
    %v624 = vmul.f32 %v354, %v518
    %v625 = vmul.f32 %v358, %v514
    %v626 = vmul.f32 %v358, %v518
    %v627 = vmul.f32 %v362, %v514
    %v628 = vmul.f32 %v362, %v518
    %v629 = vmul.f32 %v366, %v514
    %v630 = vmul.f32 %v366, %v518
    %v631 = vmul.f32 %v370, %v514
    %v632 = vmul.f32 %v370, %v518
    %v633 = vmul.f32 %v374, %v514
    %v634 = vmul.f32 %v374, %v518
    %v635 = vmul.f32 %v378, %v514
    %v636 = vmul.f32 %v378, %v518
    %v637 = vmul.f32 %v382, %v514
    %v638 = vmul.f32 %v382, %v518
    %v639 = vmul.f32 %v354, %v522
    %v640 = vmul.f32 %v354, %v526
    %v641 = vmul.f32 %v358, %v522
    %v642 = vmul.f32 %v358, %v526
    %v643 = vmul.f32 %v362, %v522
    %v644 = vmul.f32 %v362, %v526
    %v645 = vmul.f32 %v366, %v522
    %v646 = vmul.f32 %v366, %v526
    %v647 = vmul.f32 %v370, %v522
    %v648 = vmul.f32 %v370, %v526
    %v649 = vmul.f32 %v374, %v522
    %v650 = vmul.f32 %v374, %v526
    %v651 = vmul.f32 %v378, %v522
    %v652 = vmul.f32 %v378, %v526
    %v653 = vmul.f32 %v382, %v522
    %v654 = vmul.f32 %v382, %v526
    %v655 = vadd.f32 %v220, %v527
    %v656 = vadd.f32 %v221, %v528
    %v657 = vadd.f32 %v222, %v529
    %v658 = vadd.f32 %v223, %v530
    %v659 = vadd.f32 %v224, %v531
    %v660 = vadd.f32 %v225, %v532
    %v661 = vadd.f32 %v226, %v533
    %v662 = vadd.f32 %v227, %v534
    %v663 = vadd.f32 %v228, %v535
    %v664 = vadd.f32 %v229, %v536
    %v665 = vadd.f32 %v230, %v537
    %v666 = vadd.f32 %v231, %v538
    %v667 = vadd.f32 %v232, %v539
    %v668 = vadd.f32 %v233, %v540
    %v669 = vadd.f32 %v234, %v541
    %v670 = vadd.f32 %v235, %v542
    %v671 = vadd.f32 %v236, %v543
    %v672 = vadd.f32 %v237, %v544
    %v673 = vadd.f32 %v238, %v545
    %v674 = vadd.f32 %v239, %v546
    %v675 = vadd.f32 %v240, %v547
    %v676 = vadd.f32 %v241, %v548
    %v677 = vadd.f32 %v242, %v549
    %v678 = vadd.f32 %v243, %v550
    %v679 = vadd.f32 %v244, %v551
    %v680 = vadd.f32 %v245, %v552
    %v681 = vadd.f32 %v246, %v553
    %v682 = vadd.f32 %v247, %v554
    %v683 = vadd.f32 %v248, %v555
    %v684 = vadd.f32 %v249, %v556
    %v685 = vadd.f32 %v250, %v557
    %v686 = vadd.f32 %v251, %v558
    %v687 = vadd.f32 %v252, %v559
    %v688 = vadd.f32 %v253, %v560
    %v689 = vadd.f32 %v254, %v561
    %v690 = vadd.f32 %v255, %v562
    %v691 = vadd.f32 %v256, %v563
    %v692 = vadd.f32 %v257, %v564
    %v693 = vadd.f32 %v258, %v565
    %v694 = vadd.f32 %v259, %v566
    %v695 = vadd.f32 %v260, %v567
    %v696 = vadd.f32 %v261, %v568
    %v697 = vadd.f32 %v262, %v569
    %v698 = vadd.f32 %v263, %v570
    %v699 = vadd.f32 %v264, %v571
    %v700 = vadd.f32 %v265, %v572
    %v701 = vadd.f32 %v266, %v573
    %v702 = vadd.f32 %v267, %v574
    %v703 = vadd.f32 %v268, %v575
    %v704 = vadd.f32 %v269, %v576
    %v705 = vadd.f32 %v270, %v577
    %v706 = vadd.f32 %v271, %v578
    %v707 = vadd.f32 %v272, %v579
    %v708 = vadd.f32 %v273, %v580
    %v709 = vadd.f32 %v274, %v581
    %v710 = vadd.f32 %v275, %v582
    %v711 = vadd.f32 %v276, %v583
    %v712 = vadd.f32 %v277, %v584
    %v713 = vadd.f32 %v278, %v585
    %v714 = vadd.f32 %v279, %v586
    %v715 = vadd.f32 %v280, %v587
    %v716 = vadd.f32 %v281, %v588
    %v717 = vadd.f32 %v282, %v589
    %v718 = vadd.f32 %v283, %v590
    %v719 = vadd.f32 %v284, %v591
    %v720 = vadd.f32 %v285, %v592
    %v721 = vadd.f32 %v286, %v593
    %v722 = vadd.f32 %v287, %v594
    %v723 = vadd.f32 %v288, %v595
    %v724 = vadd.f32 %v289, %v596
    %v725 = vadd.f32 %v290, %v597
    %v726 = vadd.f32 %v291, %v598
    %v727 = vadd.f32 %v292, %v599
    %v728 = vadd.f32 %v293, %v600
    %v729 = vadd.f32 %v294, %v601
    %v730 = vadd.f32 %v295, %v602
    %v731 = vadd.f32 %v296, %v603
    %v732 = vadd.f32 %v297, %v604
    %v733 = vadd.f32 %v298, %v605
    %v734 = vadd.f32 %v299, %v606
    %v735 = vadd.f32 %v300, %v607
    %v736 = vadd.f32 %v301, %v608
    %v737 = vadd.f32 %v302, %v609
    %v738 = vadd.f32 %v303, %v610
    %v739 = vadd.f32 %v304, %v611
    %v740 = vadd.f32 %v305, %v612
    %v741 = vadd.f32 %v306, %v613
    %v742 = vadd.f32 %v307, %v614
    %v743 = vadd.f32 %v308, %v615
    %v744 = vadd.f32 %v309, %v616
    %v745 = vadd.f32 %v310, %v617
    %v746 = vadd.f32 %v311, %v618
    %v747 = vadd.f32 %v312, %v619
    %v748 = vadd.f32 %v313, %v620
    %v749 = vadd.f32 %v314, %v621
    %v750 = vadd.f32 %v315, %v622
    %v751 = vadd.f32 %v316, %v623
    %v752 = vadd.f32 %v317, %v624
    %v753 = vadd.f32 %v318, %v625
    %v754 = vadd.f32 %v319, %v626
    %v755 = vadd.f32 %v320, %v627
    %v756 = vadd.f32 %v321, %v628
    %v757 = vadd.f32 %v322, %v629
    %v758 = vadd.f32 %v323, %v630
    %v759 = vadd.f32 %v324, %v631
    %v760 = vadd.f32 %v325, %v632
    %v761 = vadd.f32 %v326, %v633
    %v762 = vadd.f32 %v327, %v634
    %v763 = vadd.f32 %v328, %v635
    %v764 = vadd.f32 %v329, %v636
    %v765 = vadd.f32 %v330, %v637
    %v766 = vadd.f32 %v331, %v638
    %v767 = vadd.f32 %v332, %v639
    %v768 = vadd.f32 %v333, %v640
    %v769 = vadd.f32 %v334, %v641
    %v770 = vadd.f32 %v335, %v642
    %v771 = vadd.f32 %v336, %v643
    %v772 = vadd.f32 %v337, %v644
    %v773 = vadd.f32 %v338, %v645
    %v774 = vadd.f32 %v339, %v646
    %v775 = vadd.f32 %v340, %v647
    %v776 = vadd.f32 %v341, %v648
    %v777 = vadd.f32 %v342, %v649
    %v778 = vadd.f32 %v343, %v650
    %v779 = vadd.f32 %v344, %v651
    %v780 = vadd.f32 %v345, %v652
    %v781 = vadd.f32 %v346, %v653
    %v782 = vadd.f32 %v347, %v654
    %v783 = vlaneseq
    %v784 = vshrl.u32 %v783, 7
    %v785 = vsub.s32 2, %v784
    %v786 = vrot.slane %v32, %v785
    %788 = vbcast.lane.b32.xlu0 %v786, 256
    %v789 = vpop.permute.xlu0 %788
    %s791 = sor.u32 256, 8
    %792 = vbcast.lane.b32.xlu0 %v786, %s791
    %v793 = vpop.permute.xlu0 %792
    %s795 = sor.u32 256, 16
    %796 = vbcast.lane.b32.xlu0 %v786, %s795
    %v797 = vpop.permute.xlu0 %796
    %s799 = sor.u32 256, 24
    %800 = vbcast.lane.b32.xlu0 %v786, %s799
    %v801 = vpop.permute.xlu0 %800
    %s803 = sor.u32 256, 32
    %804 = vbcast.lane.b32.xlu0 %v786, %s803
    %v805 = vpop.permute.xlu0 %804
    %s807 = sor.u32 256, 40
    %808 = vbcast.lane.b32.xlu0 %v786, %s807
    %v809 = vpop.permute.xlu0 %808
    %s811 = sor.u32 256, 48
    %812 = vbcast.lane.b32.xlu0 %v786, %s811
    %v813 = vpop.permute.xlu0 %812
    %s815 = sor.u32 256, 56
    %816 = vbcast.lane.b32.xlu0 %v786, %s815
    %v817 = vpop.permute.xlu0 %816
    %v818 = vlaneseq
    %v819 = vshrl.u32 %v818, 7
    %v820 = vsub.s32 2, %v819
    %v821 = vrot.slane %v24, %v820
    %v822 = vlaneseq
    %v823 = vshrl.u32 %v822, 7
    %v824 = vsub.s32 6, %v823
    %v825 = vrot.slane %v24, %v824
    %v826 = vlaneseq
    %v827 = vshrl.u32 %v826, 7
    %v828 = vsub.s32 2, %v827
    %v829 = vrot.slane %v25, %v828
    %v830 = vlaneseq
    %v831 = vshrl.u32 %v830, 7
    %v832 = vsub.s32 6, %v831
    %v833 = vrot.slane %v25, %v832
    %v834 = vlaneseq
    %v835 = vshrl.u32 %v834, 7
    %v836 = vsub.s32 2, %v835
    %v837 = vrot.slane %v26, %v836
    %v838 = vlaneseq
    %v839 = vshrl.u32 %v838, 7
    %v840 = vsub.s32 6, %v839
    %v841 = vrot.slane %v26, %v840
    %v842 = vlaneseq
    %v843 = vshrl.u32 %v842, 7
    %v844 = vsub.s32 2, %v843
    %v845 = vrot.slane %v27, %v844
    %v846 = vlaneseq
    %v847 = vshrl.u32 %v846, 7
    %v848 = vsub.s32 6, %v847
    %v849 = vrot.slane %v27, %v848
    %v850 = vlaneseq
    %v851 = vshrl.u32 %v850, 7
    %v852 = vsub.s32 2, %v851
    %v853 = vrot.slane %v28, %v852
    %v854 = vlaneseq
    %v855 = vshrl.u32 %v854, 7
    %v856 = vsub.s32 6, %v855
    %v857 = vrot.slane %v28, %v856
    %v858 = vlaneseq
    %v859 = vshrl.u32 %v858, 7
    %v860 = vsub.s32 2, %v859
    %v861 = vrot.slane %v29, %v860
    %v862 = vlaneseq
    %v863 = vshrl.u32 %v862, 7
    %v864 = vsub.s32 6, %v863
    %v865 = vrot.slane %v29, %v864
    %v866 = vlaneseq
    %v867 = vshrl.u32 %v866, 7
    %v868 = vsub.s32 2, %v867
    %v869 = vrot.slane %v30, %v868
    %v870 = vlaneseq
    %v871 = vshrl.u32 %v870, 7
    %v872 = vsub.s32 6, %v871
    %v873 = vrot.slane %v30, %v872
    %v874 = vlaneseq
    %v875 = vshrl.u32 %v874, 7
    %v876 = vsub.s32 2, %v875
    %v877 = vrot.slane %v31, %v876
    %v878 = vlaneseq
    %v879 = vshrl.u32 %v878, 7
    %v880 = vsub.s32 6, %v879
    %v881 = vrot.slane %v31, %v880
    %v898 = vlaneseq
    %v899 = vshrl.u32 %v898, 7
    %v900 = vsub.s32 2, %v899
    %v901 = vrot.slane %v821, %v900
    %v902 = vlaneseq
    %v903 = vshrl.u32 %v902, 7
    %v904 = vsub.s32 2, %v903
    %v905 = vrot.slane %v825, %v904
    %v906 = vlaneseq
    %v907 = vshrl.u32 %v906, 7
    %v908 = vsub.s32 2, %v907
    %v909 = vrot.slane %v829, %v908
    %v910 = vlaneseq
    %v911 = vshrl.u32 %v910, 7
    %v912 = vsub.s32 2, %v911
    %v913 = vrot.slane %v833, %v912
    %v914 = vlaneseq
    %v915 = vshrl.u32 %v914, 7
    %v916 = vsub.s32 2, %v915
    %v917 = vrot.slane %v837, %v916
    %v918 = vlaneseq
    %v919 = vshrl.u32 %v918, 7
    %v920 = vsub.s32 2, %v919
    %v921 = vrot.slane %v841, %v920
    %v922 = vlaneseq
    %v923 = vshrl.u32 %v922, 7
    %v924 = vsub.s32 2, %v923
    %v925 = vrot.slane %v845, %v924
    %v926 = vlaneseq
    %v927 = vshrl.u32 %v926, 7
    %v928 = vsub.s32 2, %v927
    %v929 = vrot.slane %v849, %v928
    %v930 = vlaneseq
    %v931 = vshrl.u32 %v930, 7
    %v932 = vsub.s32 2, %v931
    %v933 = vrot.slane %v853, %v932
    %v934 = vlaneseq
    %v935 = vshrl.u32 %v934, 7
    %v936 = vsub.s32 2, %v935
    %v937 = vrot.slane %v857, %v936
    %v938 = vlaneseq
    %v939 = vshrl.u32 %v938, 7
    %v940 = vsub.s32 2, %v939
    %v941 = vrot.slane %v861, %v940
    %v942 = vlaneseq
    %v943 = vshrl.u32 %v942, 7
    %v944 = vsub.s32 2, %v943
    %v945 = vrot.slane %v865, %v944
    %v946 = vlaneseq
    %v947 = vshrl.u32 %v946, 7
    %v948 = vsub.s32 2, %v947
    %v949 = vrot.slane %v869, %v948
    %v950 = vlaneseq
    %v951 = vshrl.u32 %v950, 7
    %v952 = vsub.s32 2, %v951
    %v953 = vrot.slane %v873, %v952
    %v954 = vlaneseq
    %v955 = vshrl.u32 %v954, 7
    %v956 = vsub.s32 2, %v955
    %v957 = vrot.slane %v877, %v956
    %v958 = vlaneseq
    %v959 = vshrl.u32 %v958, 7
    %v960 = vsub.s32 2, %v959
    %v961 = vrot.slane %v881, %v960
    %v962 = vmul.f32 %v789, %v901
    %v963 = vmul.f32 %v789, %v905
    %v964 = vmul.f32 %v793, %v901
    %v965 = vmul.f32 %v793, %v905
    %v966 = vmul.f32 %v797, %v901
    %v967 = vmul.f32 %v797, %v905
    %v968 = vmul.f32 %v801, %v901
    %v969 = vmul.f32 %v801, %v905
    %v970 = vmul.f32 %v805, %v901
    %v971 = vmul.f32 %v805, %v905
    %v972 = vmul.f32 %v809, %v901
    %v973 = vmul.f32 %v809, %v905
    %v974 = vmul.f32 %v813, %v901
    %v975 = vmul.f32 %v813, %v905
    %v976 = vmul.f32 %v817, %v901
    %v977 = vmul.f32 %v817, %v905
    %v978 = vmul.f32 %v789, %v909
    %v979 = vmul.f32 %v789, %v913
    %v980 = vmul.f32 %v793, %v909
    %v981 = vmul.f32 %v793, %v913
    %v982 = vmul.f32 %v797, %v909
    %v983 = vmul.f32 %v797, %v913
    %v984 = vmul.f32 %v801, %v909
    %v985 = vmul.f32 %v801, %v913
    %v986 = vmul.f32 %v805, %v909
    %v987 = vmul.f32 %v805, %v913
    %v988 = vmul.f32 %v809, %v909
    %v989 = vmul.f32 %v809, %v913
    %v990 = vmul.f32 %v813, %v909
    %v991 = vmul.f32 %v813, %v913
    %v992 = vmul.f32 %v817, %v909
    %v993 = vmul.f32 %v817, %v913
    %v994 = vmul.f32 %v789, %v917
    %v995 = vmul.f32 %v789, %v921
    %v996 = vmul.f32 %v793, %v917
    %v997 = vmul.f32 %v793, %v921
    %v998 = vmul.f32 %v797, %v917
    %v999 = vmul.f32 %v797, %v921
    %v1000 = vmul.f32 %v801, %v917
    %v1001 = vmul.f32 %v801, %v921
    %v1002 = vmul.f32 %v805, %v917
    %v1003 = vmul.f32 %v805, %v921
    %v1004 = vmul.f32 %v809, %v917
    %v1005 = vmul.f32 %v809, %v921
    %v1006 = vmul.f32 %v813, %v917
    %v1007 = vmul.f32 %v813, %v921
    %v1008 = vmul.f32 %v817, %v917
    %v1009 = vmul.f32 %v817, %v921
    %v1010 = vmul.f32 %v789, %v925
    %v1011 = vmul.f32 %v789, %v929
    %v1012 = vmul.f32 %v793, %v925
    %v1013 = vmul.f32 %v793, %v929
    %v1014 = vmul.f32 %v797, %v925
    %v1015 = vmul.f32 %v797, %v929
    %v1016 = vmul.f32 %v801, %v925
    %v1017 = vmul.f32 %v801, %v929
    %v1018 = vmul.f32 %v805, %v925
    %v1019 = vmul.f32 %v805, %v929
    %v1020 = vmul.f32 %v809, %v925
    %v1021 = vmul.f32 %v809, %v929
    %v1022 = vmul.f32 %v813, %v925
    %v1023 = vmul.f32 %v813, %v929
    %v1024 = vmul.f32 %v817, %v925
    %v1025 = vmul.f32 %v817, %v929
    %v1026 = vmul.f32 %v789, %v933
    %v1027 = vmul.f32 %v789, %v937
    %v1028 = vmul.f32 %v793, %v933
    %v1029 = vmul.f32 %v793, %v937
    %v1030 = vmul.f32 %v797, %v933
    %v1031 = vmul.f32 %v797, %v937
    %v1032 = vmul.f32 %v801, %v933
    %v1033 = vmul.f32 %v801, %v937
    %v1034 = vmul.f32 %v805, %v933
    %v1035 = vmul.f32 %v805, %v937
    %v1036 = vmul.f32 %v809, %v933
    %v1037 = vmul.f32 %v809, %v937
    %v1038 = vmul.f32 %v813, %v933
    %v1039 = vmul.f32 %v813, %v937
    %v1040 = vmul.f32 %v817, %v933
    %v1041 = vmul.f32 %v817, %v937
    %v1042 = vmul.f32 %v789, %v941
    %v1043 = vmul.f32 %v789, %v945
    %v1044 = vmul.f32 %v793, %v941
    %v1045 = vmul.f32 %v793, %v945
    %v1046 = vmul.f32 %v797, %v941
    %v1047 = vmul.f32 %v797, %v945
    %v1048 = vmul.f32 %v801, %v941
    %v1049 = vmul.f32 %v801, %v945
    %v1050 = vmul.f32 %v805, %v941
    %v1051 = vmul.f32 %v805, %v945
    %v1052 = vmul.f32 %v809, %v941
    %v1053 = vmul.f32 %v809, %v945
    %v1054 = vmul.f32 %v813, %v941
    %v1055 = vmul.f32 %v813, %v945
    %v1056 = vmul.f32 %v817, %v941
    %v1057 = vmul.f32 %v817, %v945
    %v1058 = vmul.f32 %v789, %v949
    %v1059 = vmul.f32 %v789, %v953
    %v1060 = vmul.f32 %v793, %v949
    %v1061 = vmul.f32 %v793, %v953
    %v1062 = vmul.f32 %v797, %v949
    %v1063 = vmul.f32 %v797, %v953
    %v1064 = vmul.f32 %v801, %v949
    %v1065 = vmul.f32 %v801, %v953
    %v1066 = vmul.f32 %v805, %v949
    %v1067 = vmul.f32 %v805, %v953
    %v1068 = vmul.f32 %v809, %v949
    %v1069 = vmul.f32 %v809, %v953
    %v1070 = vmul.f32 %v813, %v949
    %v1071 = vmul.f32 %v813, %v953
    %v1072 = vmul.f32 %v817, %v949
    %v1073 = vmul.f32 %v817, %v953
    %v1074 = vmul.f32 %v789, %v957
    %v1075 = vmul.f32 %v789, %v961
    %v1076 = vmul.f32 %v793, %v957
    %v1077 = vmul.f32 %v793, %v961
    %v1078 = vmul.f32 %v797, %v957
    %v1079 = vmul.f32 %v797, %v961
    %v1080 = vmul.f32 %v801, %v957
    %v1081 = vmul.f32 %v801, %v961
    %v1082 = vmul.f32 %v805, %v957
    %v1083 = vmul.f32 %v805, %v961
    %v1084 = vmul.f32 %v809, %v957
    %v1085 = vmul.f32 %v809, %v961
    %v1086 = vmul.f32 %v813, %v957
    %v1087 = vmul.f32 %v813, %v961
    %v1088 = vmul.f32 %v817, %v957
    %v1089 = vmul.f32 %v817, %v961
    %v1090 = vadd.f32 %v655, %v962
    %v1091 = vadd.f32 %v656, %v963
    %v1092 = vadd.f32 %v657, %v964
    %v1093 = vadd.f32 %v658, %v965
    %v1094 = vadd.f32 %v659, %v966
    %v1095 = vadd.f32 %v660, %v967
    %v1096 = vadd.f32 %v661, %v968
    %v1097 = vadd.f32 %v662, %v969
    %v1098 = vadd.f32 %v663, %v970
    %v1099 = vadd.f32 %v664, %v971
    %v1100 = vadd.f32 %v665, %v972
    %v1101 = vadd.f32 %v666, %v973
    %v1102 = vadd.f32 %v667, %v974
    %v1103 = vadd.f32 %v668, %v975
    %v1104 = vadd.f32 %v669, %v976
    %v1105 = vadd.f32 %v670, %v977
    %v1106 = vadd.f32 %v671, %v978
    %v1107 = vadd.f32 %v672, %v979
    %v1108 = vadd.f32 %v673, %v980
    %v1109 = vadd.f32 %v674, %v981
    %v1110 = vadd.f32 %v675, %v982
    %v1111 = vadd.f32 %v676, %v983
    %v1112 = vadd.f32 %v677, %v984
    %v1113 = vadd.f32 %v678, %v985
    %v1114 = vadd.f32 %v679, %v986
    %v1115 = vadd.f32 %v680, %v987
    %v1116 = vadd.f32 %v681, %v988
    %v1117 = vadd.f32 %v682, %v989
    %v1118 = vadd.f32 %v683, %v990
    %v1119 = vadd.f32 %v684, %v991
    %v1120 = vadd.f32 %v685, %v992
    %v1121 = vadd.f32 %v686, %v993
    %v1122 = vadd.f32 %v687, %v994
    %v1123 = vadd.f32 %v688, %v995
    %v1124 = vadd.f32 %v689, %v996
    %v1125 = vadd.f32 %v690, %v997
    %v1126 = vadd.f32 %v691, %v998
    %v1127 = vadd.f32 %v692, %v999
    %v1128 = vadd.f32 %v693, %v1000
    %v1129 = vadd.f32 %v694, %v1001
    %v1130 = vadd.f32 %v695, %v1002
    %v1131 = vadd.f32 %v696, %v1003
    %v1132 = vadd.f32 %v697, %v1004
    %v1133 = vadd.f32 %v698, %v1005
    %v1134 = vadd.f32 %v699, %v1006
    %v1135 = vadd.f32 %v700, %v1007
    %v1136 = vadd.f32 %v701, %v1008
    %v1137 = vadd.f32 %v702, %v1009
    %v1138 = vadd.f32 %v703, %v1010
    %v1139 = vadd.f32 %v704, %v1011
    %v1140 = vadd.f32 %v705, %v1012
    %v1141 = vadd.f32 %v706, %v1013
    %v1142 = vadd.f32 %v707, %v1014
    %v1143 = vadd.f32 %v708, %v1015
    %v1144 = vadd.f32 %v709, %v1016
    %v1145 = vadd.f32 %v710, %v1017
    %v1146 = vadd.f32 %v711, %v1018
    %v1147 = vadd.f32 %v712, %v1019
    %v1148 = vadd.f32 %v713, %v1020
    %v1149 = vadd.f32 %v714, %v1021
    %v1150 = vadd.f32 %v715, %v1022
    %v1151 = vadd.f32 %v716, %v1023
    %v1152 = vadd.f32 %v717, %v1024
    %v1153 = vadd.f32 %v718, %v1025
    %v1154 = vadd.f32 %v719, %v1026
    %v1155 = vadd.f32 %v720, %v1027
    %v1156 = vadd.f32 %v721, %v1028
    %v1157 = vadd.f32 %v722, %v1029
    %v1158 = vadd.f32 %v723, %v1030
    %v1159 = vadd.f32 %v724, %v1031
    %v1160 = vadd.f32 %v725, %v1032
    %v1161 = vadd.f32 %v726, %v1033
    %v1162 = vadd.f32 %v727, %v1034
    %v1163 = vadd.f32 %v728, %v1035
    %v1164 = vadd.f32 %v729, %v1036
    %v1165 = vadd.f32 %v730, %v1037
    %v1166 = vadd.f32 %v731, %v1038
    %v1167 = vadd.f32 %v732, %v1039
    %v1168 = vadd.f32 %v733, %v1040
    %v1169 = vadd.f32 %v734, %v1041
    %v1170 = vadd.f32 %v735, %v1042
    %v1171 = vadd.f32 %v736, %v1043
    %v1172 = vadd.f32 %v737, %v1044
    %v1173 = vadd.f32 %v738, %v1045
    %v1174 = vadd.f32 %v739, %v1046
    %v1175 = vadd.f32 %v740, %v1047
    %v1176 = vadd.f32 %v741, %v1048
    %v1177 = vadd.f32 %v742, %v1049
    %v1178 = vadd.f32 %v743, %v1050
    %v1179 = vadd.f32 %v744, %v1051
    %v1180 = vadd.f32 %v745, %v1052
    %v1181 = vadd.f32 %v746, %v1053
    %v1182 = vadd.f32 %v747, %v1054
    %v1183 = vadd.f32 %v748, %v1055
    %v1184 = vadd.f32 %v749, %v1056
    %v1185 = vadd.f32 %v750, %v1057
    %v1186 = vadd.f32 %v751, %v1058
    %v1187 = vadd.f32 %v752, %v1059
    %v1188 = vadd.f32 %v753, %v1060
    %v1189 = vadd.f32 %v754, %v1061
    %v1190 = vadd.f32 %v755, %v1062
    %v1191 = vadd.f32 %v756, %v1063
    %v1192 = vadd.f32 %v757, %v1064
    %v1193 = vadd.f32 %v758, %v1065
    %v1194 = vadd.f32 %v759, %v1066
    %v1195 = vadd.f32 %v760, %v1067
    %v1196 = vadd.f32 %v761, %v1068
    %v1197 = vadd.f32 %v762, %v1069
    %v1198 = vadd.f32 %v763, %v1070
    %v1199 = vadd.f32 %v764, %v1071
    %v1200 = vadd.f32 %v765, %v1072
    %v1201 = vadd.f32 %v766, %v1073
    %v1202 = vadd.f32 %v767, %v1074
    %v1203 = vadd.f32 %v768, %v1075
    %v1204 = vadd.f32 %v769, %v1076
    %v1205 = vadd.f32 %v770, %v1077
    %v1206 = vadd.f32 %v771, %v1078
    %v1207 = vadd.f32 %v772, %v1079
    %v1208 = vadd.f32 %v773, %v1080
    %v1209 = vadd.f32 %v774, %v1081
    %v1210 = vadd.f32 %v775, %v1082
    %v1211 = vadd.f32 %v776, %v1083
    %v1212 = vadd.f32 %v777, %v1084
    %v1213 = vadd.f32 %v778, %v1085
    %v1214 = vadd.f32 %v779, %v1086
    %v1215 = vadd.f32 %v780, %v1087
    %v1216 = vadd.f32 %v781, %v1088
    %v1217 = vadd.f32 %v782, %v1089
    %v1218 = vlaneseq
    %v1219 = vshrl.u32 %v1218, 7
    %v1220 = vsub.s32 3, %v1219
    %v1221 = vrot.slane %v32, %v1220
    %1223 = vbcast.lane.b32.xlu0 %v1221, 256
    %v1224 = vpop.permute.xlu0 %1223
    %s1226 = sor.u32 256, 8
    %1227 = vbcast.lane.b32.xlu0 %v1221, %s1226
    %v1228 = vpop.permute.xlu0 %1227
    %s1230 = sor.u32 256, 16
    %1231 = vbcast.lane.b32.xlu0 %v1221, %s1230
    %v1232 = vpop.permute.xlu0 %1231
    %s1234 = sor.u32 256, 24
    %1235 = vbcast.lane.b32.xlu0 %v1221, %s1234
    %v1236 = vpop.permute.xlu0 %1235
    %s1238 = sor.u32 256, 32
    %1239 = vbcast.lane.b32.xlu0 %v1221, %s1238
    %v1240 = vpop.permute.xlu0 %1239
    %s1242 = sor.u32 256, 40
    %1243 = vbcast.lane.b32.xlu0 %v1221, %s1242
    %v1244 = vpop.permute.xlu0 %1243
    %s1246 = sor.u32 256, 48
    %1247 = vbcast.lane.b32.xlu0 %v1221, %s1246
    %v1248 = vpop.permute.xlu0 %1247
    %s1250 = sor.u32 256, 56
    %1251 = vbcast.lane.b32.xlu0 %v1221, %s1250
    %v1252 = vpop.permute.xlu0 %1251
    %v1253 = vlaneseq
    %v1254 = vshrl.u32 %v1253, 7
    %v1255 = vsub.s32 3, %v1254
    %v1256 = vrot.slane %v24, %v1255
    %v1257 = vlaneseq
    %v1258 = vshrl.u32 %v1257, 7
    %v1259 = vsub.s32 7, %v1258
    %v1260 = vrot.slane %v24, %v1259
    %v1261 = vlaneseq
    %v1262 = vshrl.u32 %v1261, 7
    %v1263 = vsub.s32 3, %v1262
    %v1264 = vrot.slane %v25, %v1263
    %v1265 = vlaneseq
    %v1266 = vshrl.u32 %v1265, 7
    %v1267 = vsub.s32 7, %v1266
    %v1268 = vrot.slane %v25, %v1267
    %v1269 = vlaneseq
    %v1270 = vshrl.u32 %v1269, 7
    %v1271 = vsub.s32 3, %v1270
    %v1272 = vrot.slane %v26, %v1271
    %v1273 = vlaneseq
    %v1274 = vshrl.u32 %v1273, 7
    %v1275 = vsub.s32 7, %v1274
    %v1276 = vrot.slane %v26, %v1275
    %v1277 = vlaneseq
    %v1278 = vshrl.u32 %v1277, 7
    %v1279 = vsub.s32 3, %v1278
    %v1280 = vrot.slane %v27, %v1279
    %v1281 = vlaneseq
    %v1282 = vshrl.u32 %v1281, 7
    %v1283 = vsub.s32 7, %v1282
    %v1284 = vrot.slane %v27, %v1283
    %v1285 = vlaneseq
    %v1286 = vshrl.u32 %v1285, 7
    %v1287 = vsub.s32 3, %v1286
    %v1288 = vrot.slane %v28, %v1287
    %v1289 = vlaneseq
    %v1290 = vshrl.u32 %v1289, 7
    %v1291 = vsub.s32 7, %v1290
    %v1292 = vrot.slane %v28, %v1291
    %v1293 = vlaneseq
    %v1294 = vshrl.u32 %v1293, 7
    %v1295 = vsub.s32 3, %v1294
    %v1296 = vrot.slane %v29, %v1295
    %v1297 = vlaneseq
    %v1298 = vshrl.u32 %v1297, 7
    %v1299 = vsub.s32 7, %v1298
    %v1300 = vrot.slane %v29, %v1299
    %v1301 = vlaneseq
    %v1302 = vshrl.u32 %v1301, 7
    %v1303 = vsub.s32 3, %v1302
    %v1304 = vrot.slane %v30, %v1303
    %v1305 = vlaneseq
    %v1306 = vshrl.u32 %v1305, 7
    %v1307 = vsub.s32 7, %v1306
    %v1308 = vrot.slane %v30, %v1307
    %v1309 = vlaneseq
    %v1310 = vshrl.u32 %v1309, 7
    %v1311 = vsub.s32 3, %v1310
    %v1312 = vrot.slane %v31, %v1311
    %v1313 = vlaneseq
    %v1314 = vshrl.u32 %v1313, 7
    %v1315 = vsub.s32 7, %v1314
    %v1316 = vrot.slane %v31, %v1315
    %v1333 = vlaneseq
    %v1334 = vshrl.u32 %v1333, 7
    %v1335 = vsub.s32 3, %v1334
    %v1336 = vrot.slane %v1256, %v1335
    %v1337 = vlaneseq
    %v1338 = vshrl.u32 %v1337, 7
    %v1339 = vsub.s32 3, %v1338
    %v1340 = vrot.slane %v1260, %v1339
    %v1341 = vlaneseq
    %v1342 = vshrl.u32 %v1341, 7
    %v1343 = vsub.s32 3, %v1342
    %v1344 = vrot.slane %v1264, %v1343
    %v1345 = vlaneseq
    %v1346 = vshrl.u32 %v1345, 7
    %v1347 = vsub.s32 3, %v1346
    %v1348 = vrot.slane %v1268, %v1347
    %v1349 = vlaneseq
    %v1350 = vshrl.u32 %v1349, 7
    %v1351 = vsub.s32 3, %v1350
    %v1352 = vrot.slane %v1272, %v1351
    %v1353 = vlaneseq
    %v1354 = vshrl.u32 %v1353, 7
    %v1355 = vsub.s32 3, %v1354
    %v1356 = vrot.slane %v1276, %v1355
    %v1357 = vlaneseq
    %v1358 = vshrl.u32 %v1357, 7
    %v1359 = vsub.s32 3, %v1358
    %v1360 = vrot.slane %v1280, %v1359
    %v1361 = vlaneseq
    %v1362 = vshrl.u32 %v1361, 7
    %v1363 = vsub.s32 3, %v1362
    %v1364 = vrot.slane %v1284, %v1363
    %v1365 = vlaneseq
    %v1366 = vshrl.u32 %v1365, 7
    %v1367 = vsub.s32 3, %v1366
    %v1368 = vrot.slane %v1288, %v1367
    %v1369 = vlaneseq
    %v1370 = vshrl.u32 %v1369, 7
    %v1371 = vsub.s32 3, %v1370
    %v1372 = vrot.slane %v1292, %v1371
    %v1373 = vlaneseq
    %v1374 = vshrl.u32 %v1373, 7
    %v1375 = vsub.s32 3, %v1374
    %v1376 = vrot.slane %v1296, %v1375
    %v1377 = vlaneseq
    %v1378 = vshrl.u32 %v1377, 7
    %v1379 = vsub.s32 3, %v1378
    %v1380 = vrot.slane %v1300, %v1379
    %v1381 = vlaneseq
    %v1382 = vshrl.u32 %v1381, 7
    %v1383 = vsub.s32 3, %v1382
    %v1384 = vrot.slane %v1304, %v1383
    %v1385 = vlaneseq
    %v1386 = vshrl.u32 %v1385, 7
    %v1387 = vsub.s32 3, %v1386
    %v1388 = vrot.slane %v1308, %v1387
    %v1389 = vlaneseq
    %v1390 = vshrl.u32 %v1389, 7
    %v1391 = vsub.s32 3, %v1390
    %v1392 = vrot.slane %v1312, %v1391
    %v1393 = vlaneseq
    %v1394 = vshrl.u32 %v1393, 7
    %v1395 = vsub.s32 3, %v1394
    %v1396 = vrot.slane %v1316, %v1395
    %v1397 = vmul.f32 %v1224, %v1336
    %v1398 = vmul.f32 %v1224, %v1340
    %v1399 = vmul.f32 %v1228, %v1336
    %v1400 = vmul.f32 %v1228, %v1340
    %v1401 = vmul.f32 %v1232, %v1336
    %v1402 = vmul.f32 %v1232, %v1340
    %v1403 = vmul.f32 %v1236, %v1336
    %v1404 = vmul.f32 %v1236, %v1340
    %v1405 = vmul.f32 %v1240, %v1336
    %v1406 = vmul.f32 %v1240, %v1340
    %v1407 = vmul.f32 %v1244, %v1336
    %v1408 = vmul.f32 %v1244, %v1340
    %v1409 = vmul.f32 %v1248, %v1336
    %v1410 = vmul.f32 %v1248, %v1340
    %v1411 = vmul.f32 %v1252, %v1336
    %v1412 = vmul.f32 %v1252, %v1340
    %v1413 = vmul.f32 %v1224, %v1344
    %v1414 = vmul.f32 %v1224, %v1348
    %v1415 = vmul.f32 %v1228, %v1344
    %v1416 = vmul.f32 %v1228, %v1348
    %v1417 = vmul.f32 %v1232, %v1344
    %v1418 = vmul.f32 %v1232, %v1348
    %v1419 = vmul.f32 %v1236, %v1344
    %v1420 = vmul.f32 %v1236, %v1348
    %v1421 = vmul.f32 %v1240, %v1344
    %v1422 = vmul.f32 %v1240, %v1348
    %v1423 = vmul.f32 %v1244, %v1344
    %v1424 = vmul.f32 %v1244, %v1348
    %v1425 = vmul.f32 %v1248, %v1344
    %v1426 = vmul.f32 %v1248, %v1348
    %v1427 = vmul.f32 %v1252, %v1344
    %v1428 = vmul.f32 %v1252, %v1348
    %v1429 = vmul.f32 %v1224, %v1352
    %v1430 = vmul.f32 %v1224, %v1356
    %v1431 = vmul.f32 %v1228, %v1352
    %v1432 = vmul.f32 %v1228, %v1356
    %v1433 = vmul.f32 %v1232, %v1352
    %v1434 = vmul.f32 %v1232, %v1356
    %v1435 = vmul.f32 %v1236, %v1352
    %v1436 = vmul.f32 %v1236, %v1356
    %v1437 = vmul.f32 %v1240, %v1352
    %v1438 = vmul.f32 %v1240, %v1356
    %v1439 = vmul.f32 %v1244, %v1352
    %v1440 = vmul.f32 %v1244, %v1356
    %v1441 = vmul.f32 %v1248, %v1352
    %v1442 = vmul.f32 %v1248, %v1356
    %v1443 = vmul.f32 %v1252, %v1352
    %v1444 = vmul.f32 %v1252, %v1356
    %v1445 = vmul.f32 %v1224, %v1360
    %v1446 = vmul.f32 %v1224, %v1364
    %v1447 = vmul.f32 %v1228, %v1360
    %v1448 = vmul.f32 %v1228, %v1364
    %v1449 = vmul.f32 %v1232, %v1360
    %v1450 = vmul.f32 %v1232, %v1364
    %v1451 = vmul.f32 %v1236, %v1360
    %v1452 = vmul.f32 %v1236, %v1364
    %v1453 = vmul.f32 %v1240, %v1360
    %v1454 = vmul.f32 %v1240, %v1364
    %v1455 = vmul.f32 %v1244, %v1360
    %v1456 = vmul.f32 %v1244, %v1364
    %v1457 = vmul.f32 %v1248, %v1360
    %v1458 = vmul.f32 %v1248, %v1364
    %v1459 = vmul.f32 %v1252, %v1360
    %v1460 = vmul.f32 %v1252, %v1364
    %v1461 = vmul.f32 %v1224, %v1368
    %v1462 = vmul.f32 %v1224, %v1372
    %v1463 = vmul.f32 %v1228, %v1368
    %v1464 = vmul.f32 %v1228, %v1372
    %v1465 = vmul.f32 %v1232, %v1368
    %v1466 = vmul.f32 %v1232, %v1372
    %v1467 = vmul.f32 %v1236, %v1368
    %v1468 = vmul.f32 %v1236, %v1372
    %v1469 = vmul.f32 %v1240, %v1368
    %v1470 = vmul.f32 %v1240, %v1372
    %v1471 = vmul.f32 %v1244, %v1368
    %v1472 = vmul.f32 %v1244, %v1372
    %v1473 = vmul.f32 %v1248, %v1368
    %v1474 = vmul.f32 %v1248, %v1372
    %v1475 = vmul.f32 %v1252, %v1368
    %v1476 = vmul.f32 %v1252, %v1372
    %v1477 = vmul.f32 %v1224, %v1376
    %v1478 = vmul.f32 %v1224, %v1380
    %v1479 = vmul.f32 %v1228, %v1376
    %v1480 = vmul.f32 %v1228, %v1380
    %v1481 = vmul.f32 %v1232, %v1376
    %v1482 = vmul.f32 %v1232, %v1380
    %v1483 = vmul.f32 %v1236, %v1376
    %v1484 = vmul.f32 %v1236, %v1380
    %v1485 = vmul.f32 %v1240, %v1376
    %v1486 = vmul.f32 %v1240, %v1380
    %v1487 = vmul.f32 %v1244, %v1376
    %v1488 = vmul.f32 %v1244, %v1380
    %v1489 = vmul.f32 %v1248, %v1376
    %v1490 = vmul.f32 %v1248, %v1380
    %v1491 = vmul.f32 %v1252, %v1376
    %v1492 = vmul.f32 %v1252, %v1380
    %v1493 = vmul.f32 %v1224, %v1384
    %v1494 = vmul.f32 %v1224, %v1388
    %v1495 = vmul.f32 %v1228, %v1384
    %v1496 = vmul.f32 %v1228, %v1388
    %v1497 = vmul.f32 %v1232, %v1384
    %v1498 = vmul.f32 %v1232, %v1388
    %v1499 = vmul.f32 %v1236, %v1384
    %v1500 = vmul.f32 %v1236, %v1388
    %v1501 = vmul.f32 %v1240, %v1384
    %v1502 = vmul.f32 %v1240, %v1388
    %v1503 = vmul.f32 %v1244, %v1384
    %v1504 = vmul.f32 %v1244, %v1388
    %v1505 = vmul.f32 %v1248, %v1384
    %v1506 = vmul.f32 %v1248, %v1388
    %v1507 = vmul.f32 %v1252, %v1384
    %v1508 = vmul.f32 %v1252, %v1388
    %v1509 = vmul.f32 %v1224, %v1392
    %v1510 = vmul.f32 %v1224, %v1396
    %v1511 = vmul.f32 %v1228, %v1392
    %v1512 = vmul.f32 %v1228, %v1396
    %v1513 = vmul.f32 %v1232, %v1392
    %v1514 = vmul.f32 %v1232, %v1396
    %v1515 = vmul.f32 %v1236, %v1392
    %v1516 = vmul.f32 %v1236, %v1396
    %v1517 = vmul.f32 %v1240, %v1392
    %v1518 = vmul.f32 %v1240, %v1396
    %v1519 = vmul.f32 %v1244, %v1392
    %v1520 = vmul.f32 %v1244, %v1396
    %v1521 = vmul.f32 %v1248, %v1392
    %v1522 = vmul.f32 %v1248, %v1396
    %v1523 = vmul.f32 %v1252, %v1392
    %v1524 = vmul.f32 %v1252, %v1396
    %v1525 = vadd.f32 %v1090, %v1397
    %v1526 = vadd.f32 %v1091, %v1398
    %v1527 = vadd.f32 %v1092, %v1399
    %v1528 = vadd.f32 %v1093, %v1400
    %v1529 = vadd.f32 %v1094, %v1401
    %v1530 = vadd.f32 %v1095, %v1402
    %v1531 = vadd.f32 %v1096, %v1403
    %v1532 = vadd.f32 %v1097, %v1404
    %v1533 = vadd.f32 %v1098, %v1405
    %v1534 = vadd.f32 %v1099, %v1406
    %v1535 = vadd.f32 %v1100, %v1407
    %v1536 = vadd.f32 %v1101, %v1408
    %v1537 = vadd.f32 %v1102, %v1409
    %v1538 = vadd.f32 %v1103, %v1410
    %v1539 = vadd.f32 %v1104, %v1411
    %v1540 = vadd.f32 %v1105, %v1412
    %v1541 = vadd.f32 %v1106, %v1413
    %v1542 = vadd.f32 %v1107, %v1414
    %v1543 = vadd.f32 %v1108, %v1415
    %v1544 = vadd.f32 %v1109, %v1416
    %v1545 = vadd.f32 %v1110, %v1417
    %v1546 = vadd.f32 %v1111, %v1418
    %v1547 = vadd.f32 %v1112, %v1419
    %v1548 = vadd.f32 %v1113, %v1420
    %v1549 = vadd.f32 %v1114, %v1421
    %v1550 = vadd.f32 %v1115, %v1422
    %v1551 = vadd.f32 %v1116, %v1423
    %v1552 = vadd.f32 %v1117, %v1424
    %v1553 = vadd.f32 %v1118, %v1425
    %v1554 = vadd.f32 %v1119, %v1426
    %v1555 = vadd.f32 %v1120, %v1427
    %v1556 = vadd.f32 %v1121, %v1428
    %v1557 = vadd.f32 %v1122, %v1429
    %v1558 = vadd.f32 %v1123, %v1430
    %v1559 = vadd.f32 %v1124, %v1431
    %v1560 = vadd.f32 %v1125, %v1432
    %v1561 = vadd.f32 %v1126, %v1433
    %v1562 = vadd.f32 %v1127, %v1434
    %v1563 = vadd.f32 %v1128, %v1435
    %v1564 = vadd.f32 %v1129, %v1436
    %v1565 = vadd.f32 %v1130, %v1437
    %v1566 = vadd.f32 %v1131, %v1438
    %v1567 = vadd.f32 %v1132, %v1439
    %v1568 = vadd.f32 %v1133, %v1440
    %v1569 = vadd.f32 %v1134, %v1441
    %v1570 = vadd.f32 %v1135, %v1442
    %v1571 = vadd.f32 %v1136, %v1443
    %v1572 = vadd.f32 %v1137, %v1444
    %v1573 = vadd.f32 %v1138, %v1445
    %v1574 = vadd.f32 %v1139, %v1446
    %v1575 = vadd.f32 %v1140, %v1447
    %v1576 = vadd.f32 %v1141, %v1448
    %v1577 = vadd.f32 %v1142, %v1449
    %v1578 = vadd.f32 %v1143, %v1450
    %v1579 = vadd.f32 %v1144, %v1451
    %v1580 = vadd.f32 %v1145, %v1452
    %v1581 = vadd.f32 %v1146, %v1453
    %v1582 = vadd.f32 %v1147, %v1454
    %v1583 = vadd.f32 %v1148, %v1455
    %v1584 = vadd.f32 %v1149, %v1456
    %v1585 = vadd.f32 %v1150, %v1457
    %v1586 = vadd.f32 %v1151, %v1458
    %v1587 = vadd.f32 %v1152, %v1459
    %v1588 = vadd.f32 %v1153, %v1460
    %v1589 = vadd.f32 %v1154, %v1461
    %v1590 = vadd.f32 %v1155, %v1462
    %v1591 = vadd.f32 %v1156, %v1463
    %v1592 = vadd.f32 %v1157, %v1464
    %v1593 = vadd.f32 %v1158, %v1465
    %v1594 = vadd.f32 %v1159, %v1466
    %v1595 = vadd.f32 %v1160, %v1467
    %v1596 = vadd.f32 %v1161, %v1468
    %v1597 = vadd.f32 %v1162, %v1469
    %v1598 = vadd.f32 %v1163, %v1470
    %v1599 = vadd.f32 %v1164, %v1471
    %v1600 = vadd.f32 %v1165, %v1472
    %v1601 = vadd.f32 %v1166, %v1473
    %v1602 = vadd.f32 %v1167, %v1474
    %v1603 = vadd.f32 %v1168, %v1475
    %v1604 = vadd.f32 %v1169, %v1476
    %v1605 = vadd.f32 %v1170, %v1477
    %v1606 = vadd.f32 %v1171, %v1478
    %v1607 = vadd.f32 %v1172, %v1479
    %v1608 = vadd.f32 %v1173, %v1480
    %v1609 = vadd.f32 %v1174, %v1481
    %v1610 = vadd.f32 %v1175, %v1482
    %v1611 = vadd.f32 %v1176, %v1483
    %v1612 = vadd.f32 %v1177, %v1484
    %v1613 = vadd.f32 %v1178, %v1485
    %v1614 = vadd.f32 %v1179, %v1486
    %v1615 = vadd.f32 %v1180, %v1487
    %v1616 = vadd.f32 %v1181, %v1488
    %v1617 = vadd.f32 %v1182, %v1489
    %v1618 = vadd.f32 %v1183, %v1490
    %v1619 = vadd.f32 %v1184, %v1491
    %v1620 = vadd.f32 %v1185, %v1492
    %v1621 = vadd.f32 %v1186, %v1493
    %v1622 = vadd.f32 %v1187, %v1494
    %v1623 = vadd.f32 %v1188, %v1495
    %v1624 = vadd.f32 %v1189, %v1496
    %v1625 = vadd.f32 %v1190, %v1497
    %v1626 = vadd.f32 %v1191, %v1498
    %v1627 = vadd.f32 %v1192, %v1499
    %v1628 = vadd.f32 %v1193, %v1500
    %v1629 = vadd.f32 %v1194, %v1501
    %v1630 = vadd.f32 %v1195, %v1502
    %v1631 = vadd.f32 %v1196, %v1503
    %v1632 = vadd.f32 %v1197, %v1504
    %v1633 = vadd.f32 %v1198, %v1505
    %v1634 = vadd.f32 %v1199, %v1506
    %v1635 = vadd.f32 %v1200, %v1507
    %v1636 = vadd.f32 %v1201, %v1508
    %v1637 = vadd.f32 %v1202, %v1509
    %v1638 = vadd.f32 %v1203, %v1510
    %v1639 = vadd.f32 %v1204, %v1511
    %v1640 = vadd.f32 %v1205, %v1512
    %v1641 = vadd.f32 %v1206, %v1513
    %v1642 = vadd.f32 %v1207, %v1514
    %v1643 = vadd.f32 %v1208, %v1515
    %v1644 = vadd.f32 %v1209, %v1516
    %v1645 = vadd.f32 %v1210, %v1517
    %v1646 = vadd.f32 %v1211, %v1518
    %v1647 = vadd.f32 %v1212, %v1519
    %v1648 = vadd.f32 %v1213, %v1520
    %v1649 = vadd.f32 %v1214, %v1521
    %v1650 = vadd.f32 %v1215, %v1522
    %v1651 = vadd.f32 %v1216, %v1523
    %v1652 = vadd.f32 %v1217, %v1524
    %v1653 = vld [vmem:[%s2] sm:$0xff]
    %v1654 = vld [vmem:[%s2 + $0x8] sm:$0xff]
    %v1655 = vld [vmem:[%s2 + $0x10] sm:$0xff]
    %v1656 = vld [vmem:[%s2 + $0x18] sm:$0xff]
    %v1657 = vld [vmem:[%s2 + $0x20] sm:$0xff]
    %v1658 = vld [vmem:[%s2 + $0x28] sm:$0xff]
    %v1659 = vld [vmem:[%s2 + $0x30] sm:$0xff]
    %v1660 = vld [vmem:[%s2 + $0x38] sm:$0xff]
    %1662 = vset.pattern.permute.xlu0 0
    %1663 = vperm.xlu0 %1662, %v1653
    %v1664 = vpop.permute.xlu0 %1663
    %1667 = vset.pattern.permute.xlu0 0
    %1668 = vperm.xlu0 %1667, %v1654
    %v1669 = vpop.permute.xlu0 %1668
    %1672 = vset.pattern.permute.xlu0 0
    %1673 = vperm.xlu0 %1672, %v1655
    %v1674 = vpop.permute.xlu0 %1673
    %1677 = vset.pattern.permute.xlu0 0
    %1678 = vperm.xlu0 %1677, %v1656
    %v1679 = vpop.permute.xlu0 %1678
    %1682 = vset.pattern.permute.xlu0 0
    %1683 = vperm.xlu0 %1682, %v1657
    %v1684 = vpop.permute.xlu0 %1683
    %1687 = vset.pattern.permute.xlu0 0
    %1688 = vperm.xlu0 %1687, %v1658
    %v1689 = vpop.permute.xlu0 %1688
    %1692 = vset.pattern.permute.xlu0 0
    %1693 = vperm.xlu0 %1692, %v1659
    %v1694 = vpop.permute.xlu0 %1693
    %1697 = vset.pattern.permute.xlu0 0
    %1698 = vperm.xlu0 %1697, %v1660
    %v1699 = vpop.permute.xlu0 %1698
    %v1701 = vadd.f32 %v1525, %v1664
    %v1702 = vadd.f32 %v1526, %v1664
    %v1703 = vadd.f32 %v1527, %v1669
    %v1704 = vadd.f32 %v1528, %v1669
    %v1705 = vadd.f32 %v1529, %v1674
    %v1706 = vadd.f32 %v1530, %v1674
    %v1707 = vadd.f32 %v1531, %v1679
    %v1708 = vadd.f32 %v1532, %v1679
    %v1709 = vadd.f32 %v1533, %v1684
    %v1710 = vadd.f32 %v1534, %v1684
    %v1711 = vadd.f32 %v1535, %v1689
    %v1712 = vadd.f32 %v1536, %v1689
    %v1713 = vadd.f32 %v1537, %v1694
    %v1714 = vadd.f32 %v1538, %v1694
    %v1715 = vadd.f32 %v1539, %v1699
    %v1716 = vadd.f32 %v1540, %v1699
    %v1717 = vadd.f32 %v1541, %v1664
    %v1718 = vadd.f32 %v1542, %v1664
    %v1719 = vadd.f32 %v1543, %v1669
    %v1720 = vadd.f32 %v1544, %v1669
    %v1721 = vadd.f32 %v1545, %v1674
    %v1722 = vadd.f32 %v1546, %v1674
    %v1723 = vadd.f32 %v1547, %v1679
    %v1724 = vadd.f32 %v1548, %v1679
    %v1725 = vadd.f32 %v1549, %v1684
    %v1726 = vadd.f32 %v1550, %v1684
    %v1727 = vadd.f32 %v1551, %v1689
    %v1728 = vadd.f32 %v1552, %v1689
    %v1729 = vadd.f32 %v1553, %v1694
    %v1730 = vadd.f32 %v1554, %v1694
    %v1731 = vadd.f32 %v1555, %v1699
    %v1732 = vadd.f32 %v1556, %v1699
    %v1733 = vadd.f32 %v1557, %v1664
    %v1734 = vadd.f32 %v1558, %v1664
    %v1735 = vadd.f32 %v1559, %v1669
    %v1736 = vadd.f32 %v1560, %v1669
    %v1737 = vadd.f32 %v1561, %v1674
    %v1738 = vadd.f32 %v1562, %v1674
    %v1739 = vadd.f32 %v1563, %v1679
    %v1740 = vadd.f32 %v1564, %v1679
    %v1741 = vadd.f32 %v1565, %v1684
    %v1742 = vadd.f32 %v1566, %v1684
    %v1743 = vadd.f32 %v1567, %v1689
    %v1744 = vadd.f32 %v1568, %v1689
    %v1745 = vadd.f32 %v1569, %v1694
    %v1746 = vadd.f32 %v1570, %v1694
    %v1747 = vadd.f32 %v1571, %v1699
    %v1748 = vadd.f32 %v1572, %v1699
    %v1749 = vadd.f32 %v1573, %v1664
    %v1750 = vadd.f32 %v1574, %v1664
    %v1751 = vadd.f32 %v1575, %v1669
    %v1752 = vadd.f32 %v1576, %v1669
    %v1753 = vadd.f32 %v1577, %v1674
    %v1754 = vadd.f32 %v1578, %v1674
    %v1755 = vadd.f32 %v1579, %v1679
    %v1756 = vadd.f32 %v1580, %v1679
    %v1757 = vadd.f32 %v1581, %v1684
    %v1758 = vadd.f32 %v1582, %v1684
    %v1759 = vadd.f32 %v1583, %v1689
    %v1760 = vadd.f32 %v1584, %v1689
    %v1761 = vadd.f32 %v1585, %v1694
    %v1762 = vadd.f32 %v1586, %v1694
    %v1763 = vadd.f32 %v1587, %v1699
    %v1764 = vadd.f32 %v1588, %v1699
    %v1765 = vadd.f32 %v1589, %v1664
    %v1766 = vadd.f32 %v1590, %v1664
    %v1767 = vadd.f32 %v1591, %v1669
    %v1768 = vadd.f32 %v1592, %v1669
    %v1769 = vadd.f32 %v1593, %v1674
    %v1770 = vadd.f32 %v1594, %v1674
    %v1771 = vadd.f32 %v1595, %v1679
    %v1772 = vadd.f32 %v1596, %v1679
    %v1773 = vadd.f32 %v1597, %v1684
    %v1774 = vadd.f32 %v1598, %v1684
    %v1775 = vadd.f32 %v1599, %v1689
    %v1776 = vadd.f32 %v1600, %v1689
    %v1777 = vadd.f32 %v1601, %v1694
    %v1778 = vadd.f32 %v1602, %v1694
    %v1779 = vadd.f32 %v1603, %v1699
    %v1780 = vadd.f32 %v1604, %v1699
    %v1781 = vadd.f32 %v1605, %v1664
    %v1782 = vadd.f32 %v1606, %v1664
    %v1783 = vadd.f32 %v1607, %v1669
    %v1784 = vadd.f32 %v1608, %v1669
    %v1785 = vadd.f32 %v1609, %v1674
    %v1786 = vadd.f32 %v1610, %v1674
    %v1787 = vadd.f32 %v1611, %v1679
    %v1788 = vadd.f32 %v1612, %v1679
    %v1789 = vadd.f32 %v1613, %v1684
    %v1790 = vadd.f32 %v1614, %v1684
    %v1791 = vadd.f32 %v1615, %v1689
    %v1792 = vadd.f32 %v1616, %v1689
    %v1793 = vadd.f32 %v1617, %v1694
    %v1794 = vadd.f32 %v1618, %v1694
    %v1795 = vadd.f32 %v1619, %v1699
    %v1796 = vadd.f32 %v1620, %v1699
    %v1797 = vadd.f32 %v1621, %v1664
    %v1798 = vadd.f32 %v1622, %v1664
    %v1799 = vadd.f32 %v1623, %v1669
    %v1800 = vadd.f32 %v1624, %v1669
    %v1801 = vadd.f32 %v1625, %v1674
    %v1802 = vadd.f32 %v1626, %v1674
    %v1803 = vadd.f32 %v1627, %v1679
    %v1804 = vadd.f32 %v1628, %v1679
    %v1805 = vadd.f32 %v1629, %v1684
    %v1806 = vadd.f32 %v1630, %v1684
    %v1807 = vadd.f32 %v1631, %v1689
    %v1808 = vadd.f32 %v1632, %v1689
    %v1809 = vadd.f32 %v1633, %v1694
    %v1810 = vadd.f32 %v1634, %v1694
    %v1811 = vadd.f32 %v1635, %v1699
    %v1812 = vadd.f32 %v1636, %v1699
    %v1813 = vadd.f32 %v1637, %v1664
    %v1814 = vadd.f32 %v1638, %v1664
    %v1815 = vadd.f32 %v1639, %v1669
    %v1816 = vadd.f32 %v1640, %v1669
    %v1817 = vadd.f32 %v1641, %v1674
    %v1818 = vadd.f32 %v1642, %v1674
    %v1819 = vadd.f32 %v1643, %v1679
    %v1820 = vadd.f32 %v1644, %v1679
    %v1821 = vadd.f32 %v1645, %v1684
    %v1822 = vadd.f32 %v1646, %v1684
    %v1823 = vadd.f32 %v1647, %v1689
    %v1824 = vadd.f32 %v1648, %v1689
    %v1825 = vadd.f32 %v1649, %v1694
    %v1826 = vadd.f32 %v1650, %v1694
    %v1827 = vadd.f32 %v1651, %v1699
    %v1828 = vadd.f32 %v1652, %v1699
    %v1829 = vmax.f32 %v1701, 0.0
    %v1830 = vmax.f32 %v1702, 0.0
    %v1831 = vmax.f32 %v1703, 0.0
    %v1832 = vmax.f32 %v1704, 0.0
    %v1833 = vmax.f32 %v1705, 0.0
    %v1834 = vmax.f32 %v1706, 0.0
    %v1835 = vmax.f32 %v1707, 0.0
    %v1836 = vmax.f32 %v1708, 0.0
    %v1837 = vmax.f32 %v1709, 0.0
    %v1838 = vmax.f32 %v1710, 0.0
    %v1839 = vmax.f32 %v1711, 0.0
    %v1840 = vmax.f32 %v1712, 0.0
    %v1841 = vmax.f32 %v1713, 0.0
    %v1842 = vmax.f32 %v1714, 0.0
    %v1843 = vmax.f32 %v1715, 0.0
    %v1844 = vmax.f32 %v1716, 0.0
    %v1845 = vmax.f32 %v1717, 0.0
    %v1846 = vmax.f32 %v1718, 0.0
    %v1847 = vmax.f32 %v1719, 0.0
    %v1848 = vmax.f32 %v1720, 0.0
    %v1849 = vmax.f32 %v1721, 0.0
    %v1850 = vmax.f32 %v1722, 0.0
    %v1851 = vmax.f32 %v1723, 0.0
    %v1852 = vmax.f32 %v1724, 0.0
    %v1853 = vmax.f32 %v1725, 0.0
    %v1854 = vmax.f32 %v1726, 0.0
    %v1855 = vmax.f32 %v1727, 0.0
    %v1856 = vmax.f32 %v1728, 0.0
    %v1857 = vmax.f32 %v1729, 0.0
    %v1858 = vmax.f32 %v1730, 0.0
    %v1859 = vmax.f32 %v1731, 0.0
    %v1860 = vmax.f32 %v1732, 0.0
    %v1861 = vmax.f32 %v1733, 0.0
    %v1862 = vmax.f32 %v1734, 0.0
    %v1863 = vmax.f32 %v1735, 0.0
    %v1864 = vmax.f32 %v1736, 0.0
    %v1865 = vmax.f32 %v1737, 0.0
    %v1866 = vmax.f32 %v1738, 0.0
    %v1867 = vmax.f32 %v1739, 0.0
    %v1868 = vmax.f32 %v1740, 0.0
    %v1869 = vmax.f32 %v1741, 0.0
    %v1870 = vmax.f32 %v1742, 0.0
    %v1871 = vmax.f32 %v1743, 0.0
    %v1872 = vmax.f32 %v1744, 0.0
    %v1873 = vmax.f32 %v1745, 0.0
    %v1874 = vmax.f32 %v1746, 0.0
    %v1875 = vmax.f32 %v1747, 0.0
    %v1876 = vmax.f32 %v1748, 0.0
    %v1877 = vmax.f32 %v1749, 0.0
    %v1878 = vmax.f32 %v1750, 0.0
    %v1879 = vmax.f32 %v1751, 0.0
    %v1880 = vmax.f32 %v1752, 0.0
    %v1881 = vmax.f32 %v1753, 0.0
    %v1882 = vmax.f32 %v1754, 0.0
    %v1883 = vmax.f32 %v1755, 0.0
    %v1884 = vmax.f32 %v1756, 0.0
    %v1885 = vmax.f32 %v1757, 0.0
    %v1886 = vmax.f32 %v1758, 0.0
    %v1887 = vmax.f32 %v1759, 0.0
    %v1888 = vmax.f32 %v1760, 0.0
    %v1889 = vmax.f32 %v1761, 0.0
    %v1890 = vmax.f32 %v1762, 0.0
    %v1891 = vmax.f32 %v1763, 0.0
    %v1892 = vmax.f32 %v1764, 0.0
    %v1893 = vmax.f32 %v1765, 0.0
    %v1894 = vmax.f32 %v1766, 0.0
    %v1895 = vmax.f32 %v1767, 0.0
    %v1896 = vmax.f32 %v1768, 0.0
    %v1897 = vmax.f32 %v1769, 0.0
    %v1898 = vmax.f32 %v1770, 0.0
    %v1899 = vmax.f32 %v1771, 0.0
    %v1900 = vmax.f32 %v1772, 0.0
    %v1901 = vmax.f32 %v1773, 0.0
    %v1902 = vmax.f32 %v1774, 0.0
    %v1903 = vmax.f32 %v1775, 0.0
    %v1904 = vmax.f32 %v1776, 0.0
    %v1905 = vmax.f32 %v1777, 0.0
    %v1906 = vmax.f32 %v1778, 0.0
    %v1907 = vmax.f32 %v1779, 0.0
    %v1908 = vmax.f32 %v1780, 0.0
    %v1909 = vmax.f32 %v1781, 0.0
    %v1910 = vmax.f32 %v1782, 0.0
    %v1911 = vmax.f32 %v1783, 0.0
    %v1912 = vmax.f32 %v1784, 0.0
    %v1913 = vmax.f32 %v1785, 0.0
    %v1914 = vmax.f32 %v1786, 0.0
    %v1915 = vmax.f32 %v1787, 0.0
    %v1916 = vmax.f32 %v1788, 0.0
    %v1917 = vmax.f32 %v1789, 0.0
    %v1918 = vmax.f32 %v1790, 0.0
    %v1919 = vmax.f32 %v1791, 0.0
    %v1920 = vmax.f32 %v1792, 0.0
    %v1921 = vmax.f32 %v1793, 0.0
    %v1922 = vmax.f32 %v1794, 0.0
    %v1923 = vmax.f32 %v1795, 0.0
    %v1924 = vmax.f32 %v1796, 0.0
    %v1925 = vmax.f32 %v1797, 0.0
    %v1926 = vmax.f32 %v1798, 0.0
    %v1927 = vmax.f32 %v1799, 0.0
    %v1928 = vmax.f32 %v1800, 0.0
    %v1929 = vmax.f32 %v1801, 0.0
    %v1930 = vmax.f32 %v1802, 0.0
    %v1931 = vmax.f32 %v1803, 0.0
    %v1932 = vmax.f32 %v1804, 0.0
    %v1933 = vmax.f32 %v1805, 0.0
    %v1934 = vmax.f32 %v1806, 0.0
    %v1935 = vmax.f32 %v1807, 0.0
    %v1936 = vmax.f32 %v1808, 0.0
    %v1937 = vmax.f32 %v1809, 0.0
    %v1938 = vmax.f32 %v1810, 0.0
    %v1939 = vmax.f32 %v1811, 0.0
    %v1940 = vmax.f32 %v1812, 0.0
    %v1941 = vmax.f32 %v1813, 0.0
    %v1942 = vmax.f32 %v1814, 0.0
    %v1943 = vmax.f32 %v1815, 0.0
    %v1944 = vmax.f32 %v1816, 0.0
    %v1945 = vmax.f32 %v1817, 0.0
    %v1946 = vmax.f32 %v1818, 0.0
    %v1947 = vmax.f32 %v1819, 0.0
    %v1948 = vmax.f32 %v1820, 0.0
    %v1949 = vmax.f32 %v1821, 0.0
    %v1950 = vmax.f32 %v1822, 0.0
    %v1951 = vmax.f32 %v1823, 0.0
    %v1952 = vmax.f32 %v1824, 0.0
    %v1953 = vmax.f32 %v1825, 0.0
    %v1954 = vmax.f32 %v1826, 0.0
    %v1955 = vmax.f32 %v1827, 0.0
    %v1956 = vmax.f32 %v1828, 0.0
    %v1957 = vadd.f32 %v1829, %v1830
    %1958 = vadd.xlane.f32.xlu0 %v1957
    %v1959 = vpop.xlane.xlu0 %1958
    %v1960 = vadd.f32 %v1831, %v1832
    %1961 = vadd.xlane.f32.xlu0 %v1960
    %v1962 = vpop.xlane.xlu0 %1961
    %v1963 = vadd.f32 %v1833, %v1834
    %1964 = vadd.xlane.f32.xlu0 %v1963
    %v1965 = vpop.xlane.xlu0 %1964
    %v1966 = vadd.f32 %v1835, %v1836
    %1967 = vadd.xlane.f32.xlu0 %v1966
    %v1968 = vpop.xlane.xlu0 %1967
    %v1969 = vadd.f32 %v1837, %v1838
    %1970 = vadd.xlane.f32.xlu0 %v1969
    %v1971 = vpop.xlane.xlu0 %1970
    %v1972 = vadd.f32 %v1839, %v1840
    %1973 = vadd.xlane.f32.xlu0 %v1972
    %v1974 = vpop.xlane.xlu0 %1973
    %v1975 = vadd.f32 %v1841, %v1842
    %1976 = vadd.xlane.f32.xlu0 %v1975
    %v1977 = vpop.xlane.xlu0 %1976
    %v1978 = vadd.f32 %v1843, %v1844
    %1979 = vadd.xlane.f32.xlu0 %v1978
    %v1980 = vpop.xlane.xlu0 %1979
    %v1981 = vadd.f32 %v1845, %v1846
    %1982 = vadd.xlane.f32.xlu0 %v1981
    %v1983 = vpop.xlane.xlu0 %1982
    %v1984 = vadd.f32 %v1847, %v1848
    %1985 = vadd.xlane.f32.xlu0 %v1984
    %v1986 = vpop.xlane.xlu0 %1985
    %v1987 = vadd.f32 %v1849, %v1850
    %1988 = vadd.xlane.f32.xlu0 %v1987
    %v1989 = vpop.xlane.xlu0 %1988
    %v1990 = vadd.f32 %v1851, %v1852
    %1991 = vadd.xlane.f32.xlu0 %v1990
    %v1992 = vpop.xlane.xlu0 %1991
    %v1993 = vadd.f32 %v1853, %v1854
    %1994 = vadd.xlane.f32.xlu0 %v1993
    %v1995 = vpop.xlane.xlu0 %1994
    %v1996 = vadd.f32 %v1855, %v1856
    %1997 = vadd.xlane.f32.xlu0 %v1996
    %v1998 = vpop.xlane.xlu0 %1997
    %v1999 = vadd.f32 %v1857, %v1858
    %2000 = vadd.xlane.f32.xlu0 %v1999
    %v2001 = vpop.xlane.xlu0 %2000
    %v2002 = vadd.f32 %v1859, %v1860
    %2003 = vadd.xlane.f32.xlu0 %v2002
    %v2004 = vpop.xlane.xlu0 %2003
    %v2005 = vadd.f32 %v1861, %v1862
    %2006 = vadd.xlane.f32.xlu0 %v2005
    %v2007 = vpop.xlane.xlu0 %2006
    %v2008 = vadd.f32 %v1863, %v1864
    %2009 = vadd.xlane.f32.xlu0 %v2008
    %v2010 = vpop.xlane.xlu0 %2009
    %v2011 = vadd.f32 %v1865, %v1866
    %2012 = vadd.xlane.f32.xlu0 %v2011
    %v2013 = vpop.xlane.xlu0 %2012
    %v2014 = vadd.f32 %v1867, %v1868
    %2015 = vadd.xlane.f32.xlu0 %v2014
    %v2016 = vpop.xlane.xlu0 %2015
    %v2017 = vadd.f32 %v1869, %v1870
    %2018 = vadd.xlane.f32.xlu0 %v2017
    %v2019 = vpop.xlane.xlu0 %2018
    %v2020 = vadd.f32 %v1871, %v1872
    %2021 = vadd.xlane.f32.xlu0 %v2020
    %v2022 = vpop.xlane.xlu0 %2021
    %v2023 = vadd.f32 %v1873, %v1874
    %2024 = vadd.xlane.f32.xlu0 %v2023
    %v2025 = vpop.xlane.xlu0 %2024
    %v2026 = vadd.f32 %v1875, %v1876
    %2027 = vadd.xlane.f32.xlu0 %v2026
    %v2028 = vpop.xlane.xlu0 %2027
    %v2029 = vadd.f32 %v1877, %v1878
    %2030 = vadd.xlane.f32.xlu0 %v2029
    %v2031 = vpop.xlane.xlu0 %2030
    %v2032 = vadd.f32 %v1879, %v1880
    %2033 = vadd.xlane.f32.xlu0 %v2032
    %v2034 = vpop.xlane.xlu0 %2033
    %v2035 = vadd.f32 %v1881, %v1882
    %2036 = vadd.xlane.f32.xlu0 %v2035
    %v2037 = vpop.xlane.xlu0 %2036
    %v2038 = vadd.f32 %v1883, %v1884
    %2039 = vadd.xlane.f32.xlu0 %v2038
    %v2040 = vpop.xlane.xlu0 %2039
    %v2041 = vadd.f32 %v1885, %v1886
    %2042 = vadd.xlane.f32.xlu0 %v2041
    %v2043 = vpop.xlane.xlu0 %2042
    %v2044 = vadd.f32 %v1887, %v1888
    %2045 = vadd.xlane.f32.xlu0 %v2044
    %v2046 = vpop.xlane.xlu0 %2045
    %v2047 = vadd.f32 %v1889, %v1890
    %2048 = vadd.xlane.f32.xlu0 %v2047
    %v2049 = vpop.xlane.xlu0 %2048
    %v2050 = vadd.f32 %v1891, %v1892
    %2051 = vadd.xlane.f32.xlu0 %v2050
    %v2052 = vpop.xlane.xlu0 %2051
    %v2053 = vadd.f32 %v1893, %v1894
    %2054 = vadd.xlane.f32.xlu0 %v2053
    %v2055 = vpop.xlane.xlu0 %2054
    %v2056 = vadd.f32 %v1895, %v1896
    %2057 = vadd.xlane.f32.xlu0 %v2056
    %v2058 = vpop.xlane.xlu0 %2057
    %v2059 = vadd.f32 %v1897, %v1898
    %2060 = vadd.xlane.f32.xlu0 %v2059
    %v2061 = vpop.xlane.xlu0 %2060
    %v2062 = vadd.f32 %v1899, %v1900
    %2063 = vadd.xlane.f32.xlu0 %v2062
    %v2064 = vpop.xlane.xlu0 %2063
    %v2065 = vadd.f32 %v1901, %v1902
    %2066 = vadd.xlane.f32.xlu0 %v2065
    %v2067 = vpop.xlane.xlu0 %2066
    %v2068 = vadd.f32 %v1903, %v1904
    %2069 = vadd.xlane.f32.xlu0 %v2068
    %v2070 = vpop.xlane.xlu0 %2069
    %v2071 = vadd.f32 %v1905, %v1906
    %2072 = vadd.xlane.f32.xlu0 %v2071
    %v2073 = vpop.xlane.xlu0 %2072
    %v2074 = vadd.f32 %v1907, %v1908
    %2075 = vadd.xlane.f32.xlu0 %v2074
    %v2076 = vpop.xlane.xlu0 %2075
    %v2077 = vadd.f32 %v1909, %v1910
    %2078 = vadd.xlane.f32.xlu0 %v2077
    %v2079 = vpop.xlane.xlu0 %2078
    %v2080 = vadd.f32 %v1911, %v1912
    %2081 = vadd.xlane.f32.xlu0 %v2080
    %v2082 = vpop.xlane.xlu0 %2081
    %v2083 = vadd.f32 %v1913, %v1914
    %2084 = vadd.xlane.f32.xlu0 %v2083
    %v2085 = vpop.xlane.xlu0 %2084
    %v2086 = vadd.f32 %v1915, %v1916
    %2087 = vadd.xlane.f32.xlu0 %v2086
    %v2088 = vpop.xlane.xlu0 %2087
    %v2089 = vadd.f32 %v1917, %v1918
    %2090 = vadd.xlane.f32.xlu0 %v2089
    %v2091 = vpop.xlane.xlu0 %2090
    %v2092 = vadd.f32 %v1919, %v1920
    %2093 = vadd.xlane.f32.xlu0 %v2092
    %v2094 = vpop.xlane.xlu0 %2093
    %v2095 = vadd.f32 %v1921, %v1922
    %2096 = vadd.xlane.f32.xlu0 %v2095
    %v2097 = vpop.xlane.xlu0 %2096
    %v2098 = vadd.f32 %v1923, %v1924
    %2099 = vadd.xlane.f32.xlu0 %v2098
    %v2100 = vpop.xlane.xlu0 %2099
    %v2101 = vadd.f32 %v1925, %v1926
    %2102 = vadd.xlane.f32.xlu0 %v2101
    %v2103 = vpop.xlane.xlu0 %2102
    %v2104 = vadd.f32 %v1927, %v1928
    %2105 = vadd.xlane.f32.xlu0 %v2104
    %v2106 = vpop.xlane.xlu0 %2105
    %v2107 = vadd.f32 %v1929, %v1930
    %2108 = vadd.xlane.f32.xlu0 %v2107
    %v2109 = vpop.xlane.xlu0 %2108
    %v2110 = vadd.f32 %v1931, %v1932
    %2111 = vadd.xlane.f32.xlu0 %v2110
    %v2112 = vpop.xlane.xlu0 %2111
    %v2113 = vadd.f32 %v1933, %v1934
    %2114 = vadd.xlane.f32.xlu0 %v2113
    %v2115 = vpop.xlane.xlu0 %2114
    %v2116 = vadd.f32 %v1935, %v1936
    %2117 = vadd.xlane.f32.xlu0 %v2116
    %v2118 = vpop.xlane.xlu0 %2117
    %v2119 = vadd.f32 %v1937, %v1938
    %2120 = vadd.xlane.f32.xlu0 %v2119
    %v2121 = vpop.xlane.xlu0 %2120
    %v2122 = vadd.f32 %v1939, %v1940
    %2123 = vadd.xlane.f32.xlu0 %v2122
    %v2124 = vpop.xlane.xlu0 %2123
    %v2125 = vadd.f32 %v1941, %v1942
    %2126 = vadd.xlane.f32.xlu0 %v2125
    %v2127 = vpop.xlane.xlu0 %2126
    %v2128 = vadd.f32 %v1943, %v1944
    %2129 = vadd.xlane.f32.xlu0 %v2128
    %v2130 = vpop.xlane.xlu0 %2129
    %v2131 = vadd.f32 %v1945, %v1946
    %2132 = vadd.xlane.f32.xlu0 %v2131
    %v2133 = vpop.xlane.xlu0 %2132
    %v2134 = vadd.f32 %v1947, %v1948
    %2135 = vadd.xlane.f32.xlu0 %v2134
    %v2136 = vpop.xlane.xlu0 %2135
    %v2137 = vadd.f32 %v1949, %v1950
    %2138 = vadd.xlane.f32.xlu0 %v2137
    %v2139 = vpop.xlane.xlu0 %2138
    %v2140 = vadd.f32 %v1951, %v1952
    %2141 = vadd.xlane.f32.xlu0 %v2140
    %v2142 = vpop.xlane.xlu0 %2141
    %v2143 = vadd.f32 %v1953, %v1954
    %2144 = vadd.xlane.f32.xlu0 %v2143
    %v2145 = vpop.xlane.xlu0 %2144
    %v2146 = vadd.f32 %v1955, %v1956
    %2147 = vadd.xlane.f32.xlu0 %v2146
    %v2148 = vpop.xlane.xlu0 %2147
    %v2149 = vrcp.pop 256.0
    %v2150 = vmul.f32 %v1959, %v2149
    %v2151 = vmul.f32 %v1962, %v2149
    %v2152 = vmul.f32 %v1965, %v2149
    %v2153 = vmul.f32 %v1968, %v2149
    %v2154 = vmul.f32 %v1971, %v2149
    %v2155 = vmul.f32 %v1974, %v2149
    %v2156 = vmul.f32 %v1977, %v2149
    %v2157 = vmul.f32 %v1980, %v2149
    %v2158 = vmul.f32 %v1983, %v2149
    %v2159 = vmul.f32 %v1986, %v2149
    %v2160 = vmul.f32 %v1989, %v2149
    %v2161 = vmul.f32 %v1992, %v2149
    %v2162 = vmul.f32 %v1995, %v2149
    %v2163 = vmul.f32 %v1998, %v2149
    %v2164 = vmul.f32 %v2001, %v2149
    %v2165 = vmul.f32 %v2004, %v2149
    %v2166 = vmul.f32 %v2007, %v2149
    %v2167 = vmul.f32 %v2010, %v2149
    %v2168 = vmul.f32 %v2013, %v2149
    %v2169 = vmul.f32 %v2016, %v2149
    %v2170 = vmul.f32 %v2019, %v2149
    %v2171 = vmul.f32 %v2022, %v2149
    %v2172 = vmul.f32 %v2025, %v2149
    %v2173 = vmul.f32 %v2028, %v2149
    %v2174 = vmul.f32 %v2031, %v2149
    %v2175 = vmul.f32 %v2034, %v2149
    %v2176 = vmul.f32 %v2037, %v2149
    %v2177 = vmul.f32 %v2040, %v2149
    %v2178 = vmul.f32 %v2043, %v2149
    %v2179 = vmul.f32 %v2046, %v2149
    %v2180 = vmul.f32 %v2049, %v2149
    %v2181 = vmul.f32 %v2052, %v2149
    %v2182 = vmul.f32 %v2055, %v2149
    %v2183 = vmul.f32 %v2058, %v2149
    %v2184 = vmul.f32 %v2061, %v2149
    %v2185 = vmul.f32 %v2064, %v2149
    %v2186 = vmul.f32 %v2067, %v2149
    %v2187 = vmul.f32 %v2070, %v2149
    %v2188 = vmul.f32 %v2073, %v2149
    %v2189 = vmul.f32 %v2076, %v2149
    %v2190 = vmul.f32 %v2079, %v2149
    %v2191 = vmul.f32 %v2082, %v2149
    %v2192 = vmul.f32 %v2085, %v2149
    %v2193 = vmul.f32 %v2088, %v2149
    %v2194 = vmul.f32 %v2091, %v2149
    %v2195 = vmul.f32 %v2094, %v2149
    %v2196 = vmul.f32 %v2097, %v2149
    %v2197 = vmul.f32 %v2100, %v2149
    %v2198 = vmul.f32 %v2103, %v2149
    %v2199 = vmul.f32 %v2106, %v2149
    %v2200 = vmul.f32 %v2109, %v2149
    %v2201 = vmul.f32 %v2112, %v2149
    %v2202 = vmul.f32 %v2115, %v2149
    %v2203 = vmul.f32 %v2118, %v2149
    %v2204 = vmul.f32 %v2121, %v2149
    %v2205 = vmul.f32 %v2124, %v2149
    %v2206 = vmul.f32 %v2127, %v2149
    %v2207 = vmul.f32 %v2130, %v2149
    %v2208 = vmul.f32 %v2133, %v2149
    %v2209 = vmul.f32 %v2136, %v2149
    %v2210 = vmul.f32 %v2139, %v2149
    %v2211 = vmul.f32 %v2142, %v2149
    %v2212 = vmul.f32 %v2145, %v2149
    %v2213 = vmul.f32 %v2148, %v2149
    %v2214 = vld [vmem:[%s3] sm:$0xff]
    %v2215 = vld [vmem:[%s3 + $0x8] sm:$0xff]
    %v2216 = vld [vmem:[%s3 + $0x10] sm:$0xff]
    %v2217 = vld [vmem:[%s3 + $0x18] sm:$0xff]
    %v2218 = vld [vmem:[%s4] sm:$0x1]
    %v2220 = vlaneseq
    %v2221 = vshrl.u32 %v2220, 7
    %v2222 = vsub.s32 0, %v2221
    %v2223 = vrot.slane %v2218, %v2222
    %v2257 = vlaneseq
    %v2258 = vand.u32 %v2257, 127
    %v2259 = vlaneseq
    %v2260 = vshrl.u32 %v2259, 7
    %v2261 = vsub.s32 %v2258, %v2260
    %v2262 = vrot.slane %v2150, %v2261
    %v2263 = vadd.s32 %v2258, 4294967288
    %v2264 = vlaneseq
    %v2265 = vshrl.u32 %v2264, 7
    %v2266 = vsub.s32 %v2263, %v2265
    %v2267 = vrot.slane %v2151, %v2266
    %vm2268 = vcmask 130112
    %v2269 = vsel %vm2268, %v2267, %v2262
    %v2270 = vadd.s32 %v2258, 4294967280
    %v2271 = vlaneseq
    %v2272 = vshrl.u32 %v2271, 7
    %v2273 = vsub.s32 %v2270, %v2272
    %v2274 = vrot.slane %v2152, %v2273
    %vm2275 = vcmask 195712
    %v2276 = vsel %vm2275, %v2274, %v2269
    %v2277 = vadd.s32 %v2258, 4294967272
    %v2278 = vlaneseq
    %v2279 = vshrl.u32 %v2278, 7
    %v2280 = vsub.s32 %v2277, %v2279
    %v2281 = vrot.slane %v2153, %v2280
    %vm2282 = vcmask 261312
    %v2283 = vsel %vm2282, %v2281, %v2276
    %v2284 = vlaneseq
    %v2285 = vshrl.u32 %v2284, 7
    %v2286 = vsub.s32 %v2258, %v2285
    %v2287 = vrot.slane %v2158, %v2286
    %v2288 = vlaneseq
    %v2289 = vshrl.u32 %v2288, 7
    %v2290 = vsub.s32 %v2263, %v2289
    %v2291 = vrot.slane %v2159, %v2290
    %v2292 = vsel %vm2268, %v2291, %v2287
    %v2293 = vlaneseq
    %v2294 = vshrl.u32 %v2293, 7
    %v2295 = vsub.s32 %v2270, %v2294
    %v2296 = vrot.slane %v2160, %v2295
    %v2297 = vsel %vm2275, %v2296, %v2292
    %v2298 = vlaneseq
    %v2299 = vshrl.u32 %v2298, 7
    %v2300 = vsub.s32 %v2277, %v2299
    %v2301 = vrot.slane %v2161, %v2300
    %v2302 = vsel %vm2282, %v2301, %v2297
    %v2303 = vlaneseq
    %v2304 = vshrl.u32 %v2303, 7
    %v2305 = vsub.s32 %v2258, %v2304
    %v2306 = vrot.slane %v2166, %v2305
    %v2307 = vlaneseq
    %v2308 = vshrl.u32 %v2307, 7
    %v2309 = vsub.s32 %v2263, %v2308
    %v2310 = vrot.slane %v2167, %v2309
    %v2311 = vsel %vm2268, %v2310, %v2306
    %v2312 = vlaneseq
    %v2313 = vshrl.u32 %v2312, 7
    %v2314 = vsub.s32 %v2270, %v2313
    %v2315 = vrot.slane %v2168, %v2314
    %v2316 = vsel %vm2275, %v2315, %v2311
    %v2317 = vlaneseq
    %v2318 = vshrl.u32 %v2317, 7
    %v2319 = vsub.s32 %v2277, %v2318
    %v2320 = vrot.slane %v2169, %v2319
    %v2321 = vsel %vm2282, %v2320, %v2316
    %v2322 = vlaneseq
    %v2323 = vshrl.u32 %v2322, 7
    %v2324 = vsub.s32 %v2258, %v2323
    %v2325 = vrot.slane %v2174, %v2324
    %v2326 = vlaneseq
    %v2327 = vshrl.u32 %v2326, 7
    %v2328 = vsub.s32 %v2263, %v2327
    %v2329 = vrot.slane %v2175, %v2328
    %v2330 = vsel %vm2268, %v2329, %v2325
    %v2331 = vlaneseq
    %v2332 = vshrl.u32 %v2331, 7
    %v2333 = vsub.s32 %v2270, %v2332
    %v2334 = vrot.slane %v2176, %v2333
    %v2335 = vsel %vm2275, %v2334, %v2330
    %v2336 = vlaneseq
    %v2337 = vshrl.u32 %v2336, 7
    %v2338 = vsub.s32 %v2277, %v2337
    %v2339 = vrot.slane %v2177, %v2338
    %v2340 = vsel %vm2282, %v2339, %v2335
    %v2341 = vlaneseq
    %v2342 = vshrl.u32 %v2341, 7
    %v2343 = vsub.s32 %v2258, %v2342
    %v2344 = vrot.slane %v2182, %v2343
    %v2345 = vlaneseq
    %v2346 = vshrl.u32 %v2345, 7
    %v2347 = vsub.s32 %v2263, %v2346
    %v2348 = vrot.slane %v2183, %v2347
    %v2349 = vsel %vm2268, %v2348, %v2344
    %v2350 = vlaneseq
    %v2351 = vshrl.u32 %v2350, 7
    %v2352 = vsub.s32 %v2270, %v2351
    %v2353 = vrot.slane %v2184, %v2352
    %v2354 = vsel %vm2275, %v2353, %v2349
    %v2355 = vlaneseq
    %v2356 = vshrl.u32 %v2355, 7
    %v2357 = vsub.s32 %v2277, %v2356
    %v2358 = vrot.slane %v2185, %v2357
    %v2359 = vsel %vm2282, %v2358, %v2354
    %v2360 = vlaneseq
    %v2361 = vshrl.u32 %v2360, 7
    %v2362 = vsub.s32 %v2258, %v2361
    %v2363 = vrot.slane %v2190, %v2362
    %v2364 = vlaneseq
    %v2365 = vshrl.u32 %v2364, 7
    %v2366 = vsub.s32 %v2263, %v2365
    %v2367 = vrot.slane %v2191, %v2366
    %v2368 = vsel %vm2268, %v2367, %v2363
    %v2369 = vlaneseq
    %v2370 = vshrl.u32 %v2369, 7
    %v2371 = vsub.s32 %v2270, %v2370
    %v2372 = vrot.slane %v2192, %v2371
    %v2373 = vsel %vm2275, %v2372, %v2368
    %v2374 = vlaneseq
    %v2375 = vshrl.u32 %v2374, 7
    %v2376 = vsub.s32 %v2277, %v2375
    %v2377 = vrot.slane %v2193, %v2376
    %v2378 = vsel %vm2282, %v2377, %v2373
    %v2379 = vlaneseq
    %v2380 = vshrl.u32 %v2379, 7
    %v2381 = vsub.s32 %v2258, %v2380
    %v2382 = vrot.slane %v2198, %v2381
    %v2383 = vlaneseq
    %v2384 = vshrl.u32 %v2383, 7
    %v2385 = vsub.s32 %v2263, %v2384
    %v2386 = vrot.slane %v2199, %v2385
    %v2387 = vsel %vm2268, %v2386, %v2382
    %v2388 = vlaneseq
    %v2389 = vshrl.u32 %v2388, 7
    %v2390 = vsub.s32 %v2270, %v2389
    %v2391 = vrot.slane %v2200, %v2390
    %v2392 = vsel %vm2275, %v2391, %v2387
    %v2393 = vlaneseq
    %v2394 = vshrl.u32 %v2393, 7
    %v2395 = vsub.s32 %v2277, %v2394
    %v2396 = vrot.slane %v2201, %v2395
    %v2397 = vsel %vm2282, %v2396, %v2392
    %v2398 = vlaneseq
    %v2399 = vshrl.u32 %v2398, 7
    %v2400 = vsub.s32 %v2258, %v2399
    %v2401 = vrot.slane %v2206, %v2400
    %v2402 = vlaneseq
    %v2403 = vshrl.u32 %v2402, 7
    %v2404 = vsub.s32 %v2263, %v2403
    %v2405 = vrot.slane %v2207, %v2404
    %v2406 = vsel %vm2268, %v2405, %v2401
    %v2407 = vlaneseq
    %v2408 = vshrl.u32 %v2407, 7
    %v2409 = vsub.s32 %v2270, %v2408
    %v2410 = vrot.slane %v2208, %v2409
    %v2411 = vsel %vm2275, %v2410, %v2406
    %v2412 = vlaneseq
    %v2413 = vshrl.u32 %v2412, 7
    %v2414 = vsub.s32 %v2277, %v2413
    %v2415 = vrot.slane %v2209, %v2414
    %v2416 = vsel %vm2282, %v2415, %v2411
    %vm2417 = vcmask 1041409
    %v2418 = vsel %vm2417, %v2302, %v2283
    %vm2419 = vcmask 1042434
    %v2420 = vsel %vm2419, %v2321, %v2418
    %vm2421 = vcmask 1043459
    %v2422 = vsel %vm2421, %v2340, %v2420
    %vm2423 = vcmask 1044484
    %v2424 = vsel %vm2423, %v2359, %v2422
    %vm2425 = vcmask 1045509
    %v2426 = vsel %vm2425, %v2378, %v2424
    %vm2427 = vcmask 1046534
    %v2428 = vsel %vm2427, %v2397, %v2426
    %vm2429 = vcmask 1047559
    %v2430 = vsel %vm2429, %v2416, %v2428
    %vm2431 = vcmask 261120
    %v2432 = vsel %vm2431, %v2430, 0
    %2434 = vmatprep.subr.mxu0 0.0
    %2435 = vmatpush1.msra.mxu0 %v2214
    %2436 = vmatprep.subr.mxu0 0.0
    %2437 = vmatpush1.msra.mxu0 %v2215
    %2438 = vmatprep.subr.mxu0 0.0
    %2439 = vmatpush1.msra.mxu0 %v2216
    %2440 = vmatprep.subr.mxu0 0.0
    %2441 = vmatpush1.msra.mxu0 %v2217
    %2442 = vmatprep.subr.mxu0 0.0
    %2443 = vmatpush1.msra.mxu0 0.0
    %2444 = vmatprep.subr.mxu0 0.0
    %2445 = vmatpush1.msra.mxu0 0.0
    %2446 = vmatprep.subr.mxu0 0.0
    %2447 = vmatpush1.msra.mxu0 0.0
    %2448 = vmatprep.subr.mxu0 0.0
    %2449 = vmatpush1.msra.mxu0 0.0
    %2450 = vmatprep.subr.mxu0 0.0
    %2451 = vmatpush1.msra.mxu0 0.0
    %2452 = vmatprep.subr.mxu0 0.0
    %2453 = vmatpush1.msra.mxu0 0.0
    %2454 = vmatprep.subr.mxu0 0.0
    %2455 = vmatpush1.msra.mxu0 0.0
    %2456 = vmatprep.subr.mxu0 0.0
    %2457 = vmatpush1.msra.mxu0 0.0
    %2458 = vmatprep.subr.mxu0 0.0
    %2459 = vmatpush1.msra.mxu0 0.0
    %2460 = vmatprep.subr.mxu0 0.0
    %2461 = vmatpush1.msra.mxu0 0.0
    %2462 = vmatprep.subr.mxu0 0.0
    %2463 = vmatpush1.msra.mxu0 0.0
    %2464 = vmatprep.subr.mxu0 0.0
    %2465 = vmatpush1.msra.mxu0 0.0
    %2466 = vmatprep.subr.mxu0 0.0
    %2467 = vmatpush1.msra.mxu0 0.0
    %2468 = vmatprep.subr.mxu0 0.0
    %2469 = vmatpush1.msra.mxu0 0.0
    %2470 = vmatprep.subr.mxu0 0.0
    %2471 = vmatpush1.msra.mxu0 0.0
    %2472 = vmatprep.subr.mxu0 0.0
    %2473 = vmatpush1.msra.mxu0 0.0
    %2474 = vmatprep.subr.mxu0 0.0
    %2475 = vmatpush1.msra.mxu0 0.0
    %2476 = vmatprep.subr.mxu0 0.0
    %2477 = vmatpush1.msra.mxu0 0.0
    %2478 = vmatprep.subr.mxu0 0.0
    %2479 = vmatpush1.msra.mxu0 0.0
    %2480 = vmatprep.subr.mxu0 0.0
    %2481 = vmatpush1.msra.mxu0 0.0
    %2482 = vmatprep.subr.mxu0 0.0
    %2483 = vmatpush1.msra.mxu0 0.0
    %2484 = vmatprep.subr.mxu0 0.0
    %2485 = vmatpush1.msra.mxu0 0.0
    %2486 = vmatprep.subr.mxu0 0.0
    %2487 = vmatpush1.msra.mxu0 0.0
    %2488 = vmatprep.subr.mxu0 0.0
    %2489 = vmatpush1.msra.mxu0 0.0
    %2490 = vmatprep.subr.mxu0 0.0
    %2491 = vmatpush1.msra.mxu0 0.0
    %2492 = vmatprep.subr.mxu0 0.0
    %2493 = vmatpush1.msra.mxu0 0.0
    %2494 = vmatprep.subr.mxu0 0.0
    %2495 = vmatpush1.msra.mxu0 0.0
    %2496 = vmatprep.subr.mxu0 0.0
    %2497 = vmatpush1.msra.mxu0 0.0
    %2498 = vmatprep.mubr.f32.mxu0 0.0
    %2499 = vmatmul.mubr.f32.gmra.mrb[0].mxu0 %v2432
    %v2500 = vpop.f32.mrb[0].mxu0
    %v2501 = vadd.f32 %v2223, %v2500
    %v2502 = vpop.f32.mrb[0].mxu0
    %2503 = vdwg.mxu0
    %v2536 = vlaneseq
    %v2537 = vshrl.u32 %v2536, 7
    %v2538 = vsub.s32 %v2258, %v2537
    %v2539 = vrot.slane %v2154, %v2538
    %v2540 = vlaneseq
    %v2541 = vshrl.u32 %v2540, 7
    %v2542 = vsub.s32 %v2263, %v2541
    %v2543 = vrot.slane %v2155, %v2542
    %v2544 = vsel %vm2268, %v2543, %v2539
    %v2545 = vlaneseq
    %v2546 = vshrl.u32 %v2545, 7
    %v2547 = vsub.s32 %v2270, %v2546
    %v2548 = vrot.slane %v2156, %v2547
    %v2549 = vsel %vm2275, %v2548, %v2544
    %v2550 = vlaneseq
    %v2551 = vshrl.u32 %v2550, 7
    %v2552 = vsub.s32 %v2277, %v2551
    %v2553 = vrot.slane %v2157, %v2552
    %v2554 = vsel %vm2282, %v2553, %v2549
    %v2555 = vlaneseq
    %v2556 = vshrl.u32 %v2555, 7
    %v2557 = vsub.s32 %v2258, %v2556
    %v2558 = vrot.slane %v2162, %v2557
    %v2559 = vlaneseq
    %v2560 = vshrl.u32 %v2559, 7
    %v2561 = vsub.s32 %v2263, %v2560
    %v2562 = vrot.slane %v2163, %v2561
    %v2563 = vsel %vm2268, %v2562, %v2558
    %v2564 = vlaneseq
    %v2565 = vshrl.u32 %v2564, 7
    %v2566 = vsub.s32 %v2270, %v2565
    %v2567 = vrot.slane %v2164, %v2566
    %v2568 = vsel %vm2275, %v2567, %v2563
    %v2569 = vlaneseq
    %v2570 = vshrl.u32 %v2569, 7
    %v2571 = vsub.s32 %v2277, %v2570
    %v2572 = vrot.slane %v2165, %v2571
    %v2573 = vsel %vm2282, %v2572, %v2568
    %v2574 = vlaneseq
    %v2575 = vshrl.u32 %v2574, 7
    %v2576 = vsub.s32 %v2258, %v2575
    %v2577 = vrot.slane %v2170, %v2576
    %v2578 = vlaneseq
    %v2579 = vshrl.u32 %v2578, 7
    %v2580 = vsub.s32 %v2263, %v2579
    %v2581 = vrot.slane %v2171, %v2580
    %v2582 = vsel %vm2268, %v2581, %v2577
    %v2583 = vlaneseq
    %v2584 = vshrl.u32 %v2583, 7
    %v2585 = vsub.s32 %v2270, %v2584
    %v2586 = vrot.slane %v2172, %v2585
    %v2587 = vsel %vm2275, %v2586, %v2582
    %v2588 = vlaneseq
    %v2589 = vshrl.u32 %v2588, 7
    %v2590 = vsub.s32 %v2277, %v2589
    %v2591 = vrot.slane %v2173, %v2590
    %v2592 = vsel %vm2282, %v2591, %v2587
    %v2593 = vlaneseq
    %v2594 = vshrl.u32 %v2593, 7
    %v2595 = vsub.s32 %v2258, %v2594
    %v2596 = vrot.slane %v2178, %v2595
    %v2597 = vlaneseq
    %v2598 = vshrl.u32 %v2597, 7
    %v2599 = vsub.s32 %v2263, %v2598
    %v2600 = vrot.slane %v2179, %v2599
    %v2601 = vsel %vm2268, %v2600, %v2596
    %v2602 = vlaneseq
    %v2603 = vshrl.u32 %v2602, 7
    %v2604 = vsub.s32 %v2270, %v2603
    %v2605 = vrot.slane %v2180, %v2604
    %v2606 = vsel %vm2275, %v2605, %v2601
    %v2607 = vlaneseq
    %v2608 = vshrl.u32 %v2607, 7
    %v2609 = vsub.s32 %v2277, %v2608
    %v2610 = vrot.slane %v2181, %v2609
    %v2611 = vsel %vm2282, %v2610, %v2606
    %v2612 = vlaneseq
    %v2613 = vshrl.u32 %v2612, 7
    %v2614 = vsub.s32 %v2258, %v2613
    %v2615 = vrot.slane %v2186, %v2614
    %v2616 = vlaneseq
    %v2617 = vshrl.u32 %v2616, 7
    %v2618 = vsub.s32 %v2263, %v2617
    %v2619 = vrot.slane %v2187, %v2618
    %v2620 = vsel %vm2268, %v2619, %v2615
    %v2621 = vlaneseq
    %v2622 = vshrl.u32 %v2621, 7
    %v2623 = vsub.s32 %v2270, %v2622
    %v2624 = vrot.slane %v2188, %v2623
    %v2625 = vsel %vm2275, %v2624, %v2620
    %v2626 = vlaneseq
    %v2627 = vshrl.u32 %v2626, 7
    %v2628 = vsub.s32 %v2277, %v2627
    %v2629 = vrot.slane %v2189, %v2628
    %v2630 = vsel %vm2282, %v2629, %v2625
    %v2631 = vlaneseq
    %v2632 = vshrl.u32 %v2631, 7
    %v2633 = vsub.s32 %v2258, %v2632
    %v2634 = vrot.slane %v2194, %v2633
    %v2635 = vlaneseq
    %v2636 = vshrl.u32 %v2635, 7
    %v2637 = vsub.s32 %v2263, %v2636
    %v2638 = vrot.slane %v2195, %v2637
    %v2639 = vsel %vm2268, %v2638, %v2634
    %v2640 = vlaneseq
    %v2641 = vshrl.u32 %v2640, 7
    %v2642 = vsub.s32 %v2270, %v2641
    %v2643 = vrot.slane %v2196, %v2642
    %v2644 = vsel %vm2275, %v2643, %v2639
    %v2645 = vlaneseq
    %v2646 = vshrl.u32 %v2645, 7
    %v2647 = vsub.s32 %v2277, %v2646
    %v2648 = vrot.slane %v2197, %v2647
    %v2649 = vsel %vm2282, %v2648, %v2644
    %v2650 = vlaneseq
    %v2651 = vshrl.u32 %v2650, 7
    %v2652 = vsub.s32 %v2258, %v2651
    %v2653 = vrot.slane %v2202, %v2652
    %v2654 = vlaneseq
    %v2655 = vshrl.u32 %v2654, 7
    %v2656 = vsub.s32 %v2263, %v2655
    %v2657 = vrot.slane %v2203, %v2656
    %v2658 = vsel %vm2268, %v2657, %v2653
    %v2659 = vlaneseq
    %v2660 = vshrl.u32 %v2659, 7
    %v2661 = vsub.s32 %v2270, %v2660
    %v2662 = vrot.slane %v2204, %v2661
    %v2663 = vsel %vm2275, %v2662, %v2658
    %v2664 = vlaneseq
    %v2665 = vshrl.u32 %v2664, 7
    %v2666 = vsub.s32 %v2277, %v2665
    %v2667 = vrot.slane %v2205, %v2666
    %v2668 = vsel %vm2282, %v2667, %v2663
    %v2669 = vlaneseq
    %v2670 = vshrl.u32 %v2669, 7
    %v2671 = vsub.s32 %v2258, %v2670
    %v2672 = vrot.slane %v2210, %v2671
    %v2673 = vlaneseq
    %v2674 = vshrl.u32 %v2673, 7
    %v2675 = vsub.s32 %v2263, %v2674
    %v2676 = vrot.slane %v2211, %v2675
    %v2677 = vsel %vm2268, %v2676, %v2672
    %v2678 = vlaneseq
    %v2679 = vshrl.u32 %v2678, 7
    %v2680 = vsub.s32 %v2270, %v2679
    %v2681 = vrot.slane %v2212, %v2680
    %v2682 = vsel %vm2275, %v2681, %v2677
    %v2683 = vlaneseq
    %v2684 = vshrl.u32 %v2683, 7
    %v2685 = vsub.s32 %v2277, %v2684
    %v2686 = vrot.slane %v2213, %v2685
    %v2687 = vsel %vm2282, %v2686, %v2682
    %v2688 = vsel %vm2417, %v2573, %v2554
    %v2689 = vsel %vm2419, %v2592, %v2688
    %v2690 = vsel %vm2421, %v2611, %v2689
    %v2691 = vsel %vm2423, %v2630, %v2690
    %v2692 = vsel %vm2425, %v2649, %v2691
    %v2693 = vsel %vm2427, %v2668, %v2692
    %v2694 = vsel %vm2429, %v2687, %v2693
    %v2695 = vsel %vm2431, %v2694, 0
    %2697 = vmatprep.subr.mxu0 0.0
    %2698 = vmatpush1.msra.mxu0 %v2214
    %2699 = vmatprep.subr.mxu0 0.0
    %2700 = vmatpush1.msra.mxu0 %v2215
    %2701 = vmatprep.subr.mxu0 0.0
    %2702 = vmatpush1.msra.mxu0 %v2216
    %2703 = vmatprep.subr.mxu0 0.0
    %2704 = vmatpush1.msra.mxu0 %v2217
    %2705 = vmatprep.subr.mxu0 0.0
    %2706 = vmatpush1.msra.mxu0 0.0
    %2707 = vmatprep.subr.mxu0 0.0
    %2708 = vmatpush1.msra.mxu0 0.0
    %2709 = vmatprep.subr.mxu0 0.0
    %2710 = vmatpush1.msra.mxu0 0.0
    %2711 = vmatprep.subr.mxu0 0.0
    %2712 = vmatpush1.msra.mxu0 0.0
    %2713 = vmatprep.subr.mxu0 0.0
    %2714 = vmatpush1.msra.mxu0 0.0
    %2715 = vmatprep.subr.mxu0 0.0
    %2716 = vmatpush1.msra.mxu0 0.0
    %2717 = vmatprep.subr.mxu0 0.0
    %2718 = vmatpush1.msra.mxu0 0.0
    %2719 = vmatprep.subr.mxu0 0.0
    %2720 = vmatpush1.msra.mxu0 0.0
    %2721 = vmatprep.subr.mxu0 0.0
    %2722 = vmatpush1.msra.mxu0 0.0
    %2723 = vmatprep.subr.mxu0 0.0
    %2724 = vmatpush1.msra.mxu0 0.0
    %2725 = vmatprep.subr.mxu0 0.0
    %2726 = vmatpush1.msra.mxu0 0.0
    %2727 = vmatprep.subr.mxu0 0.0
    %2728 = vmatpush1.msra.mxu0 0.0
    %2729 = vmatprep.subr.mxu0 0.0
    %2730 = vmatpush1.msra.mxu0 0.0
    %2731 = vmatprep.subr.mxu0 0.0
    %2732 = vmatpush1.msra.mxu0 0.0
    %2733 = vmatprep.subr.mxu0 0.0
    %2734 = vmatpush1.msra.mxu0 0.0
    %2735 = vmatprep.subr.mxu0 0.0
    %2736 = vmatpush1.msra.mxu0 0.0
    %2737 = vmatprep.subr.mxu0 0.0
    %2738 = vmatpush1.msra.mxu0 0.0
    %2739 = vmatprep.subr.mxu0 0.0
    %2740 = vmatpush1.msra.mxu0 0.0
    %2741 = vmatprep.subr.mxu0 0.0
    %2742 = vmatpush1.msra.mxu0 0.0
    %2743 = vmatprep.subr.mxu0 0.0
    %2744 = vmatpush1.msra.mxu0 0.0
    %2745 = vmatprep.subr.mxu0 0.0
    %2746 = vmatpush1.msra.mxu0 0.0
    %2747 = vmatprep.subr.mxu0 0.0
    %2748 = vmatpush1.msra.mxu0 0.0
    %2749 = vmatprep.subr.mxu0 0.0
    %2750 = vmatpush1.msra.mxu0 0.0
    %2751 = vmatprep.subr.mxu0 0.0
    %2752 = vmatpush1.msra.mxu0 0.0
    %2753 = vmatprep.subr.mxu0 0.0
    %2754 = vmatpush1.msra.mxu0 0.0
    %2755 = vmatprep.subr.mxu0 0.0
    %2756 = vmatpush1.msra.mxu0 0.0
    %2757 = vmatprep.subr.mxu0 0.0
    %2758 = vmatpush1.msra.mxu0 0.0
    %2759 = vmatprep.subr.mxu0 0.0
    %2760 = vmatpush1.msra.mxu0 0.0
    %2761 = vmatprep.mubr.f32.mxu0 0.0
    %2762 = vmatmul.mubr.f32.gmra.mrb[0].mxu0 %v2695
    %v2763 = vpop.f32.mrb[0].mxu0
    %v2764 = vadd.f32 %v2223, %v2763
    %v2765 = vpop.f32.mrb[0].mxu0
    %2766 = vdwg.mxu0
    %v2767 = vadd.f32 %v2501, %v2764
    %v2768 = vmul.f32 %v2767, 0.5
    %vm2769 = vcmask 80896
    %2770 = vst.msk [vmem:[#allocation2] sm:$0xff] %vm2769, %v2768
    %v2771 = vsel %vm2769, %v2501, -inf
    %2772 = vmax.xlane.f32.xlu0 %v2771
    %v2773 = vpop.xlane.xlu0 %2772
    %v2774 = vsub.f32 %v2501, %v2773
    %v2775 = vmul.f32 %v2774, 1.442695
    %v2776 = vpow.pop %v2775
    %v2777 = vsel %vm2769, %v2776, 0.0
    %2778 = vadd.xlane.f32.xlu0 %v2777
    %v2779 = vpop.xlane.xlu0 %2778
    %v2780 = vrcp.pop %v2779
    %v2781 = vmul.f32 %v2776, %v2780
    %v2782 = vsel %vm2769, %v2764, -inf
    %2783 = vmax.xlane.f32.xlu0 %v2782
    %v2784 = vpop.xlane.xlu0 %2783
    %v2785 = vsub.f32 %v2764, %v2784
    %v2786 = vmul.f32 %v2785, 1.442695
    %v2787 = vpow.pop %v2786
    %v2788 = vsel %vm2769, %v2787, 0.0
    %2789 = vadd.xlane.f32.xlu0 %v2788
    %v2790 = vpop.xlane.xlu0 %2789
    %v2791 = vrcp.pop %v2790
    %v2792 = vmul.f32 %v2787, %v2791
    %v2793 = vadd.f32 %v2781, %v2792
    %v2794 = vmul.f32 %v2793, 0.5
    %2795 = vst.msk [vmem:[#allocation4] sm:$0xff] %vm2769, %v2794
    // Predicated region
    $region22: #{tpu_custom_call.1} parent=1 // pred_check
      _
    $region23: #{tpu_custom_call.1} parent=1 // pred_check_branch
      %2797 = sbr.rel (0) target = $region25
    $region24: #{tpu_custom_call.1} parent=1 // pred_region
      %s2799 = ssub.s32 128, 128
      %2800 = vsyncadd [#allocation3], %s2799
      %s2802 = sshll.u32 [#allocation2], 4
      %s2803 = int_to_ptr.vmem [resolvable:$true] %s2802
      %2805 = dma.vmem_to_hbm [thread:$0]  %s2803, 128, %s5, [#allocation3]
    $region25: #{tpu_custom_call.1} parent=1 // pred_fallthru
      _
    // Predicated region
    $region26: #{tpu_custom_call.1} parent=1 // pred_check
      _
    $region27: #{tpu_custom_call.1} parent=1 // pred_check_branch
      %2807 = sbr.rel (0) target = $region29
    $region28: #{tpu_custom_call.1} parent=1 // pred_region
      %s2809 = ssub.s32 128, 128
      %2810 = vsyncadd [#allocation5], %s2809
      %s2812 = sshll.u32 [#allocation4], 4
      %s2813 = int_to_ptr.vmem [resolvable:$true] %s2812
      %2815 = dma.vmem_to_hbm [thread:$0]  %s2813, 128, %s6, [#allocation5]
    $region29: #{tpu_custom_call.1} parent=1 // pred_fallthru
      _
    // Predicated region
    $region30: #{tpu_custom_call.1} parent=1 // pred_check
      _
    $region31: #{tpu_custom_call.1} parent=1 // pred_check_branch
      %2817 = sbr.rel (0) target = $region33
    $region32: #{tpu_custom_call.1} parent=1 // pred_region
      %2818 = dma.done [#allocation3], 128
    $region33: #{tpu_custom_call.1} parent=1 // pred_fallthru
      _
    // Predicated region
    $region34: #{tpu_custom_call.1} parent=1 // pred_check
      _
    $region35: #{tpu_custom_call.1} parent=1 // pred_check_branch
      %2820 = sbr.rel (0) target = $region37
    $region36: #{tpu_custom_call.1} parent=1 // pred_region
      %2821 = dma.done [#allocation5], 128
    $region37: #{tpu_custom_call.1} parent=1 // pred_fallthru
      _
    %2822 = vsyncpa [#allocation3], 1
    %2823 = vsyncpa [#allocation5], 1

</llo_original>
